<compile_context>
chip_gen: v7x
topology: tpu7x:2x2x1
jax: 0.10.0
libtpu: 0.0.40
codegen_flags: <defaults>
</compile_context>

<pallas_src>
import functools

import jax
import jax.numpy as jnp
from jax.experimental import pallas as pl
from jax.experimental.pallas import tpu as pltpu


# ----------------------------------------------------------------------------
# Model configuration (small toy GIRAFFE generator)
# ----------------------------------------------------------------------------
RES = 16            # feature-map / image resolution
HW = RES * RES      # 256 pixels
N_STEPS = 8         # depth samples per ray
N_PTS = N_STEPS * HW            # 2048 sample points per image
Z_DIM = 32          # latent dim
HIDDEN = 32         # decoder hidden width
FEAT_DIM = 16       # per-point feature dim
HEAD_PAD = 24       # head output rows: 16 features + 1 density, padded to 24
RGB_PAD = 8         # RGB head rows padded 3 -> 8 (sublane-dense output block)
CHUNK_STEPS = 2     # depth steps per in-kernel chunk -> 512 lanes per chunk
NEAR, FAR = 0.5, 2.0
DELTA = (FAR - NEAR) / N_STEPS


# ----------------------------------------------------------------------------
# Fused kernel: (layer1 bias+relu) -> layer2 -> fused feat/sigma head ->
# volume compositing -> RGB head + sigmoid.   TB images per grid step.
# All big tensors are (channels, points) with points on lanes.
# ----------------------------------------------------------------------------
def _giraffe_kernel(h0_ref, zc_ref, wmid_ref, wrgb_ref, bias_ref, o_ref,
                    *, tb, hw, n_chunks, chunk_steps, delta):
    ch = chunk_steps * hw

    # Unpack the small constant slabs once (static row slices, cast to bf16
    # once for the MXU; f32 storage avoids sub-32-bit ref-slicing edge cases).
    w2 = wmid_ref[0:HIDDEN, :].astype(jnp.bfloat16)                    # (32, 32)
    w_head = wmid_ref[HIDDEN:HIDDEN + HEAD_PAD, :].astype(jnp.bfloat16)  # (24, 32)
    wrgb = wrgb_ref[...].astype(jnp.bfloat16)                          # (8, 16)
    b2 = bias_ref[0:HIDDEN, :]                                         # (32, 1)
    b_head = bias_ref[HIDDEN:HIDDEN + HEAD_PAD, :]                     # (24, 1)
    brgb = bias_ref[HIDDEN + HEAD_PAD:HIDDEN + HEAD_PAD + RGB_PAD, :]  # (8, 1)

    for b in range(tb):                       # TB images per grid step
        zc = zc_ref[b]                        # (HIDDEN, 1) per-image latent bias
        acc = jnp.zeros((FEAT_DIM, hw), jnp.float32)
        trans = jnp.ones((1, hw), jnp.float32)

        # Lane-aligned chunks over the point axis (s-major -> depth order).
        for c in range(n_chunks):
            h0c = h0_ref[:, c * ch:(c + 1) * ch]            # (HIDDEN, ch) f32
            h1 = jnp.maximum(h0c + zc, 0.0)                 # layer 1 (bias pre-combined)
            h2 = jnp.dot(w2, h1.astype(jnp.bfloat16),
                         preferred_element_type=jnp.float32)
            h2 = jnp.maximum(h2 + b2, 0.0)                  # layer 2
            head = jnp.dot(w_head, h2.astype(jnp.bfloat16),
                           preferred_element_type=jnp.float32) + b_head  # (24, ch)

            feat = head[:FEAT_DIM, :]                       # (16, ch)
            sigma = head[FEAT_DIM:FEAT_DIM + 1, :]          # (1, ch) fused density row
            alpha = 1.0 - jnp.exp(-jnp.maximum(sigma, 0.0) * delta)

            # compositing update over the depth slices inside this chunk
            for s in range(chunk_steps):
                a_s = alpha[:, s * hw:(s + 1) * hw]         # (1, HW) lane-aligned
                f_s = feat[:, s * hw:(s + 1) * hw]          # (F, HW)
                acc = acc + (trans * a_s) * f_s
                trans = trans * (1.0 - a_s)

        # neural-renderer head (1x1 conv == channel matmul) + sigmoid
        rgb = jnp.dot(wrgb, acc.astype(jnp.bfloat16),
                      preferred_element_type=jnp.float32)   # (8, HW)
        o_ref[b] = jax.nn.sigmoid(rgb + brgb)               # lane-dense store


# ----------------------------------------------------------------------------
# Parameter init.  Small weights are packed into two constant slabs.
# ----------------------------------------------------------------------------
def init_generator_params(key):
    keys = jax.random.split(key, 6)
    scale = 0.2
    w1p = scale * jax.random.normal(keys[0], (HIDDEN, 3), dtype=jnp.float32)
    w1z = scale * jax.random.normal(keys[1], (HIDDEN, Z_DIM), dtype=jnp.float32)
    b1 = jnp.zeros((HIDDEN, 1), jnp.float32)

    w2 = scale * jax.random.normal(keys[2], (HIDDEN, HIDDEN), dtype=jnp.float32)
    b2 = jnp.zeros((HIDDEN, 1), jnp.float32)

    w3f = scale * jax.random.normal(keys[3], (FEAT_DIM, HIDDEN), dtype=jnp.float32)
    w3s = scale * jax.random.normal(keys[4], (1, HIDDEN), dtype=jnp.float32)
    # Fused head weight: rows 0..15 features, row 16 density, rows 17..23 zero.
    w_head = jnp.zeros((HEAD_PAD, HIDDEN), jnp.float32)
    w_head = w_head.at[:FEAT_DIM].set(w3f).at[FEAT_DIM].set(w3s[0])
    b_head = jnp.zeros((HEAD_PAD, 1), jnp.float32)

    wrgb = jnp.zeros((RGB_PAD, FEAT_DIM), jnp.float32)
    wrgb = wrgb.at[:3].set(scale * jax.random.normal(keys[5], (3, FEAT_DIM)))
    brgb = jnp.zeros((RGB_PAD, 1), jnp.float32)

    # Packed constant slabs for the kernel.
    wmid = jnp.concatenate([w2, w_head], axis=0)                 # (56, 32) f32
    biases = jnp.concatenate([b2, b_head, brgb], axis=0)         # (64, 1) f32

    return {
        "w1p": w1p, "w1z": w1z, "b1": b1,     # layer-1 pieces hoisted to XLA
        "wmid": wmid, "wrgb": wrgb, "biases": biases,
    }


def _full_spec(arr):
    nd = arr.ndim
    return pl.BlockSpec(arr.shape, lambda g, _nd=nd: (0,) * _nd)


def _pick_tile_batch(batch_size):
    """Images per grid step: amortize step overhead but keep grid >= 2
    (both v7x TensorCores busy) when the batch allows it."""
    for tb in (8, 4, 2, 1):
        if batch_size % tb == 0 and (batch_size // tb) >= 2:
            return tb
    return batch_size  # batch_size == 1


# ----------------------------------------------------------------------------
# Generator forward: batch_size -> (B, 3, RES, RES) image (NCHW), one kernel.
# ----------------------------------------------------------------------------
@functools.partial(jax.jit, static_argnums=(2,))
def generator_forward(params, key, batch_size):
    tb = _pick_tile_batch(batch_size)
    grid = batch_size // tb

    # 1) latent codes (key threaded in; previous version hard-coded the seed)
    z = jax.random.normal(key, (batch_size, Z_DIM), jnp.float32)
    # Per-image layer-1 contribution of the latent, hoisted out of the kernel.
    zc = jnp.einsum("hz,bz->bh", params["w1z"], z)[..., None]        # (B, H, 1)

    # 2) ray sample points (batch-invariant) and hoisted layer-1 point term.
    lin = jnp.linspace(-1.0, 1.0, RES)
    xx, yy = jnp.meshgrid(lin, lin, indexing="ij")
    depth = jnp.linspace(NEAR, FAR, N_STEPS)
    pts = jnp.stack([
        jnp.broadcast_to(xx.reshape(1, HW), (N_STEPS, HW)),
        jnp.broadcast_to(yy.reshape(1, HW), (N_STEPS, HW)),
        jnp.broadcast_to(depth[:, None], (N_STEPS, HW)),
    ], axis=0).reshape(3, N_PTS)
    h0 = params["w1p"] @ pts + params["b1"]                          # (H, N) f32

    # 3) fused decoder + compositing + renderer head (single pallas_call)
    kernel = functools.partial(
        _giraffe_kernel, tb=tb, hw=HW, n_chunks=N_STEPS // CHUNK_STEPS,
        chunk_steps=CHUNK_STEPS, delta=DELTA)

    flops = int(batch_size * (2 * N_PTS * (HIDDEN * HIDDEN + HEAD_PAD * HIDDEN)
                              + 2 * RGB_PAD * FEAT_DIM * HW
                              + 6 * FEAT_DIM * N_PTS))
    transcendentals = int(batch_size * (N_PTS + RGB_PAD * HW))
    bytes_accessed = int(h0.size * 4 + zc.size * 4
                         + params["wmid"].size * 4 + params["wrgb"].size * 4
                         + params["biases"].size * 4
                         + batch_size * RGB_PAD * HW * 4)

    out = pl.pallas_call(
        kernel,
        out_shape=jax.ShapeDtypeStruct((batch_size, RGB_PAD, HW), jnp.float32),
        grid=(grid,),
        in_specs=[
            _full_spec(h0),                                       # shared layer-1 term
            pl.BlockSpec((tb, HIDDEN, 1), lambda g: (g, 0, 0)),   # per-image latent bias
            _full_spec(params["wmid"]),
            _full_spec(params["wrgb"]),
            _full_spec(params["biases"]),
        ],
        out_specs=pl.BlockSpec((tb, RGB_PAD, HW), lambda g: (g, 0, 0)),
        compiler_params=pltpu.CompilerParams(
            dimension_semantics=("parallel",)),
        cost_estimate=pl.CostEstimate(
            flops=flops, transcendentals=transcendentals,
            bytes_accessed=bytes_accessed),
    )(h0, zc, params["wmid"], params["wrgb"], params["biases"])

    # Output is already channel-major; drop padded rows -> NCHW image.
    img = out[:, :3, :].reshape(batch_size, 3, RES, RES)
    return img


# ----------------------------------------------------------------------------
# GIRAFFE container (mirrors the PyTorch wrapper semantics)
# ----------------------------------------------------------------------------
class GIRAFFE:
    """Thin container: forward(batch_size) delegates to generator_test or generator."""

    def __init__(self, discriminator=None, generator=None, generator_test=None):
        # TODO(synk): device plumbing / discriminator play no role in forward();
        # kept only for structural parity with the PyTorch module.
        self.discriminator = discriminator
        self.generator = generator
        self.generator_test = generator_test

    def forward(self, batch_size, **kwargs):
        gen = self.generator_test
        if gen is None:
            gen = self.generator
        return gen(batch_size=batch_size)

    __call__ = forward

    def generate_test_images(self):
        gen = self.generator_test
        if gen is None:
            gen = self.generator
        return gen(batch_size=1)


if __name__ == "__main__":
    params = init_generator_params(jax.random.PRNGKey(0))
    sample_key = jax.random.PRNGKey(0)   # deterministic latents for the demo

    def generator(batch_size):
        return generator_forward(params, sample_key, batch_size)

    model = GIRAFFE(discriminator=None, generator=generator, generator_test=None)

    batch_size = 2
    img = model(batch_size=batch_size)
    img = jax.block_until_ready(img)

    assert img.shape == (batch_size, 3, RES, RES), img.shape
    assert img.dtype == jnp.float32
    assert bool(jnp.all(jnp.isfinite(img)))
    assert bool(jnp.all((img >= 0.0) & (img <= 1.0)))
    print("KERNEL_OK")
</pallas_src>

<mosaic_0001>
module attributes {stable_mosaic.version = 11 : i64} {
  func.func @_giraffe_kernel(%arg0: i32, %arg1: memref<32x2048xf32, #tpu.memory_space<vmem>>, %arg2: memref<1x32x1xf32, #tpu.memory_space<vmem>>, %arg3: memref<56x32xf32, #tpu.memory_space<vmem>>, %arg4: memref<8x16xf32, #tpu.memory_space<vmem>>, %arg5: memref<64x1xf32, #tpu.memory_space<vmem>>, %arg6: memref<1x8x256xf32, #tpu.memory_space<vmem>>) attributes {dimension_semantics = [#tpu.dimension_semantics<parallel>], iteration_bounds = array<i64: 2>, scalar_prefetch = 0 : i64, scratch_operands = 0 : i64, tpu.core_type = #tpu.core_type<tc>, window_params = [{pipeline_mode = #tpu.pipeline_mode<synchronous>, transform_indices = @transform_0, window_bounds = array<i64: 32, 2048>}, {transform_indices = @transform_1, window_bounds = array<i64: 1, 32, 1>}, {pipeline_mode = #tpu.pipeline_mode<synchronous>, transform_indices = @transform_2, window_bounds = array<i64: 56, 32>}, {pipeline_mode = #tpu.pipeline_mode<synchronous>, transform_indices = @transform_3, window_bounds = array<i64: 8, 16>}, {pipeline_mode = #tpu.pipeline_mode<synchronous>, transform_indices = @transform_4, window_bounds = array<i64: 64, 1>}, {transform_indices = @transform_5, window_bounds = array<i64: 1, 8, 256>}]} {
    %c0 = arith.constant 0 : index
    %c0_0 = arith.constant 0 : index
    %0 = vector.load %arg3[%c0, %c0_0] : memref<56x32xf32, #tpu.memory_space<vmem>>, vector<32x32xf32>
    %1 = arith.truncf %0 : vector<32x32xf32> to vector<32x32xbf16>
    %c32 = arith.constant 32 : index
    %c0_1 = arith.constant 0 : index
    %2 = vector.load %arg3[%c32, %c0_1] : memref<56x32xf32, #tpu.memory_space<vmem>>, vector<24x32xf32>
    %3 = arith.truncf %2 : vector<24x32xf32> to vector<24x32xbf16>
    %c0_2 = arith.constant 0 : index
    %c0_3 = arith.constant 0 : index
    %4 = vector.load %arg4[%c0_2, %c0_3] : memref<8x16xf32, #tpu.memory_space<vmem>>, vector<8x16xf32>
    %5 = arith.truncf %4 : vector<8x16xf32> to vector<8x16xbf16>
    %c0_4 = arith.constant 0 : index
    %c0_5 = arith.constant 0 : index
    %6 = vector.load %arg5[%c0_4, %c0_5] : memref<64x1xf32, #tpu.memory_space<vmem>>, vector<32x1xf32>
    %c32_6 = arith.constant 32 : index
    %c0_7 = arith.constant 0 : index
    %7 = vector.load %arg5[%c32_6, %c0_7] : memref<64x1xf32, #tpu.memory_space<vmem>>, vector<24x1xf32>
    %c56 = arith.constant 56 : index
    %c0_8 = arith.constant 0 : index
    %8 = vector.load %arg5[%c56, %c0_8] : memref<64x1xf32, #tpu.memory_space<vmem>>, vector<8x1xf32>
    %c0_9 = arith.constant 0 : index
    %c0_10 = arith.constant 0 : index
    %c0_11 = arith.constant 0 : index
    %9 = vector.load %arg2[%c0_9, %c0_10, %c0_11] : memref<1x32x1xf32, #tpu.memory_space<vmem>>, vector<1x32x1xf32>
    %10 = vector.shape_cast %9 : vector<1x32x1xf32> to vector<32x1xf32>
    %cst = arith.constant 0.000000e+00 : f32
    %11 = vector.broadcast %cst : f32 to vector<16x256xf32>
    %cst_12 = arith.constant 1.000000e+00 : f32
    %12 = vector.broadcast %cst_12 : f32 to vector<1x256xf32>
    %c0_13 = arith.constant 0 : index
    %c0_14 = arith.constant 0 : index
    %13 = vector.load %arg1[%c0_13, %c0_14] : memref<32x2048xf32, #tpu.memory_space<vmem>>, vector<32x512xf32>
    %14 = vector.broadcast %10 : vector<32x1xf32> to vector<32x512xf32>
    %15 = arith.addf %13, %14 : vector<32x512xf32>
    %cst_15 = arith.constant 0.000000e+00 : f32
    %16 = vector.broadcast %cst_15 : f32 to vector<32x512xf32>
    %17 = arith.maximumf %15, %16 : vector<32x512xf32>
    %18 = arith.truncf %17 : vector<32x512xf32> to vector<32x512xbf16>
    %cst_16 = arith.constant dense<0.000000e+00> : vector<32x512xf32>
    %19 = tpu.matmul %1, %18, %cst_16 {dimension_numbers = #tpu.dot_dimension_numbers<[1], [0], [0], [1], [0, 0, 1, 1], [], []>} : vector<32x32xbf16>, vector<32x512xbf16>, vector<32x512xf32> -> vector<32x512xf32>
    %20 = vector.broadcast %6 : vector<32x1xf32> to vector<32x512xf32>
    %21 = arith.addf %19, %20 : vector<32x512xf32>
    %cst_17 = arith.constant 0.000000e+00 : f32
    %22 = vector.broadcast %cst_17 : f32 to vector<32x512xf32>
    %23 = arith.maximumf %21, %22 : vector<32x512xf32>
    %24 = arith.truncf %23 : vector<32x512xf32> to vector<32x512xbf16>
    %cst_18 = arith.constant dense<0.000000e+00> : vector<24x512xf32>
    %25 = tpu.matmul %3, %24, %cst_18 {dimension_numbers = #tpu.dot_dimension_numbers<[1], [0], [0], [1], [0, 0, 1, 1], [], []>} : vector<24x32xbf16>, vector<32x512xbf16>, vector<24x512xf32> -> vector<24x512xf32>
    %26 = vector.broadcast %7 : vector<24x1xf32> to vector<24x512xf32>
    %27 = arith.addf %25, %26 : vector<24x512xf32>
    %28 = vector.extract_strided_slice %27 {offsets = [0, 0], sizes = [16, 512], strides = [1, 1]} : vector<24x512xf32> to vector<16x512xf32>
    %29 = vector.extract_strided_slice %27 {offsets = [16, 0], sizes = [1, 512], strides = [1, 1]} : vector<24x512xf32> to vector<1x512xf32>
    %cst_19 = arith.constant 0.000000e+00 : f32
    %30 = vector.broadcast %cst_19 : f32 to vector<1x512xf32>
    %31 = arith.maximumf %29, %30 : vector<1x512xf32>
    %cst_20 = arith.constant 0.000000e+00 : f32
    %32 = vector.broadcast %cst_20 : f32 to vector<1x512xf32>
    %33 = arith.subf %32, %31 : vector<1x512xf32>
    %cst_21 = arith.constant 1.875000e-01 : f32
    %34 = vector.broadcast %cst_21 : f32 to vector<1x512xf32>
    %35 = arith.mulf %33, %34 : vector<1x512xf32>
    %36 = math.exp %35 : vector<1x512xf32>
    %cst_22 = arith.constant 1.000000e+00 : f32
    %37 = vector.broadcast %cst_22 : f32 to vector<1x512xf32>
    %38 = arith.subf %37, %36 : vector<1x512xf32>
    %39 = vector.extract_strided_slice %38 {offsets = [0, 0], sizes = [1, 256], strides = [1, 1]} : vector<1x512xf32> to vector<1x256xf32>
    %40 = vector.extract_strided_slice %28 {offsets = [0, 0], sizes = [16, 256], strides = [1, 1]} : vector<16x512xf32> to vector<16x256xf32>
    %41 = arith.mulf %12, %39 : vector<1x256xf32>
    %42 = vector.broadcast %41 : vector<1x256xf32> to vector<16x256xf32>
    %43 = arith.mulf %42, %40 : vector<16x256xf32>
    %44 = arith.addf %11, %43 : vector<16x256xf32>
    %cst_23 = arith.constant 1.000000e+00 : f32
    %45 = vector.broadcast %cst_23 : f32 to vector<1x256xf32>
    %46 = arith.subf %45, %39 : vector<1x256xf32>
    %47 = arith.mulf %12, %46 : vector<1x256xf32>
    %48 = vector.extract_strided_slice %38 {offsets = [0, 256], sizes = [1, 256], strides = [1, 1]} : vector<1x512xf32> to vector<1x256xf32>
    %49 = vector.extract_strided_slice %28 {offsets = [0, 256], sizes = [16, 256], strides = [1, 1]} : vector<16x512xf32> to vector<16x256xf32>
    %50 = arith.mulf %47, %48 : vector<1x256xf32>
    %51 = vector.broadcast %50 : vector<1x256xf32> to vector<16x256xf32>
    %52 = arith.mulf %51, %49 : vector<16x256xf32>
    %53 = arith.addf %44, %52 : vector<16x256xf32>
    %cst_24 = arith.constant 1.000000e+00 : f32
    %54 = vector.broadcast %cst_24 : f32 to vector<1x256xf32>
    %55 = arith.subf %54, %48 : vector<1x256xf32>
    %56 = arith.mulf %47, %55 : vector<1x256xf32>
    %c0_25 = arith.constant 0 : index
    %c512 = arith.constant 512 : index
    %57 = vector.load %arg1[%c0_25, %c512] : memref<32x2048xf32, #tpu.memory_space<vmem>>, vector<32x512xf32>
    %58 = vector.broadcast %10 : vector<32x1xf32> to vector<32x512xf32>
    %59 = arith.addf %57, %58 : vector<32x512xf32>
    %cst_26 = arith.constant 0.000000e+00 : f32
    %60 = vector.broadcast %cst_26 : f32 to vector<32x512xf32>
    %61 = arith.maximumf %59, %60 : vector<32x512xf32>
    %62 = arith.truncf %61 : vector<32x512xf32> to vector<32x512xbf16>
    %cst_27 = arith.constant dense<0.000000e+00> : vector<32x512xf32>
    %63 = tpu.matmul %1, %62, %cst_27 {dimension_numbers = #tpu.dot_dimension_numbers<[1], [0], [0], [1], [0, 0, 1, 1], [], []>} : vector<32x32xbf16>, vector<32x512xbf16>, vector<32x512xf32> -> vector<32x512xf32>
    %64 = vector.broadcast %6 : vector<32x1xf32> to vector<32x512xf32>
    %65 = arith.addf %63, %64 : vector<32x512xf32>
    %cst_28 = arith.constant 0.000000e+00 : f32
    %66 = vector.broadcast %cst_28 : f32 to vector<32x512xf32>
    %67 = arith.maximumf %65, %66 : vector<32x512xf32>
    %68 = arith.truncf %67 : vector<32x512xf32> to vector<32x512xbf16>
    %cst_29 = arith.constant dense<0.000000e+00> : vector<24x512xf32>
    %69 = tpu.matmul %3, %68, %cst_29 {dimension_numbers = #tpu.dot_dimension_numbers<[1], [0], [0], [1], [0, 0, 1, 1], [], []>} : vector<24x32xbf16>, vector<32x512xbf16>, vector<24x512xf32> -> vector<24x512xf32>
    %70 = vector.broadcast %7 : vector<24x1xf32> to vector<24x512xf32>
    %71 = arith.addf %69, %70 : vector<24x512xf32>
    %72 = vector.extract_strided_slice %71 {offsets = [0, 0], sizes = [16, 512], strides = [1, 1]} : vector<24x512xf32> to vector<16x512xf32>
    %73 = vector.extract_strided_slice %71 {offsets = [16, 0], sizes = [1, 512], strides = [1, 1]} : vector<24x512xf32> to vector<1x512xf32>
    %cst_30 = arith.constant 0.000000e+00 : f32
    %74 = vector.broadcast %cst_30 : f32 to vector<1x512xf32>
    %75 = arith.maximumf %73, %74 : vector<1x512xf32>
    %cst_31 = arith.constant 0.000000e+00 : f32
    %76 = vector.broadcast %cst_31 : f32 to vector<1x512xf32>
    %77 = arith.subf %76, %75 : vector<1x512xf32>
    %cst_32 = arith.constant 1.875000e-01 : f32
    %78 = vector.broadcast %cst_32 : f32 to vector<1x512xf32>
    %79 = arith.mulf %77, %78 : vector<1x512xf32>
    %80 = math.exp %79 : vector<1x512xf32>
    %cst_33 = arith.constant 1.000000e+00 : f32
    %81 = vector.broadcast %cst_33 : f32 to vector<1x512xf32>
    %82 = arith.subf %81, %80 : vector<1x512xf32>
    %83 = vector.extract_strided_slice %82 {offsets = [0, 0], sizes = [1, 256], strides = [1, 1]} : vector<1x512xf32> to vector<1x256xf32>
    %84 = vector.extract_strided_slice %72 {offsets = [0, 0], sizes = [16, 256], strides = [1, 1]} : vector<16x512xf32> to vector<16x256xf32>
    %85 = arith.mulf %56, %83 : vector<1x256xf32>
    %86 = vector.broadcast %85 : vector<1x256xf32> to vector<16x256xf32>
    %87 = arith.mulf %86, %84 : vector<16x256xf32>
    %88 = arith.addf %53, %87 : vector<16x256xf32>
    %cst_34 = arith.constant 1.000000e+00 : f32
    %89 = vector.broadcast %cst_34 : f32 to vector<1x256xf32>
    %90 = arith.subf %89, %83 : vector<1x256xf32>
    %91 = arith.mulf %56, %90 : vector<1x256xf32>
    %92 = vector.extract_strided_slice %82 {offsets = [0, 256], sizes = [1, 256], strides = [1, 1]} : vector<1x512xf32> to vector<1x256xf32>
    %93 = vector.extract_strided_slice %72 {offsets = [0, 256], sizes = [16, 256], strides = [1, 1]} : vector<16x512xf32> to vector<16x256xf32>
    %94 = arith.mulf %91, %92 : vector<1x256xf32>
    %95 = vector.broadcast %94 : vector<1x256xf32> to vector<16x256xf32>
    %96 = arith.mulf %95, %93 : vector<16x256xf32>
    %97 = arith.addf %88, %96 : vector<16x256xf32>
    %cst_35 = arith.constant 1.000000e+00 : f32
    %98 = vector.broadcast %cst_35 : f32 to vector<1x256xf32>
    %99 = arith.subf %98, %92 : vector<1x256xf32>
    %100 = arith.mulf %91, %99 : vector<1x256xf32>
    %c0_36 = arith.constant 0 : index
    %c1024 = arith.constant 1024 : index
    %101 = vector.load %arg1[%c0_36, %c1024] : memref<32x2048xf32, #tpu.memory_space<vmem>>, vector<32x512xf32>
    %102 = vector.broadcast %10 : vector<32x1xf32> to vector<32x512xf32>
    %103 = arith.addf %101, %102 : vector<32x512xf32>
    %cst_37 = arith.constant 0.000000e+00 : f32
    %104 = vector.broadcast %cst_37 : f32 to vector<32x512xf32>
    %105 = arith.maximumf %103, %104 : vector<32x512xf32>
    %106 = arith.truncf %105 : vector<32x512xf32> to vector<32x512xbf16>
    %cst_38 = arith.constant dense<0.000000e+00> : vector<32x512xf32>
    %107 = tpu.matmul %1, %106, %cst_38 {dimension_numbers = #tpu.dot_dimension_numbers<[1], [0], [0], [1], [0, 0, 1, 1], [], []>} : vector<32x32xbf16>, vector<32x512xbf16>, vector<32x512xf32> -> vector<32x512xf32>
    %108 = vector.broadcast %6 : vector<32x1xf32> to vector<32x512xf32>
    %109 = arith.addf %107, %108 : vector<32x512xf32>
    %cst_39 = arith.constant 0.000000e+00 : f32
    %110 = vector.broadcast %cst_39 : f32 to vector<32x512xf32>
    %111 = arith.maximumf %109, %110 : vector<32x512xf32>
    %112 = arith.truncf %111 : vector<32x512xf32> to vector<32x512xbf16>
    %cst_40 = arith.constant dense<0.000000e+00> : vector<24x512xf32>
    %113 = tpu.matmul %3, %112, %cst_40 {dimension_numbers = #tpu.dot_dimension_numbers<[1], [0], [0], [1], [0, 0, 1, 1], [], []>} : vector<24x32xbf16>, vector<32x512xbf16>, vector<24x512xf32> -> vector<24x512xf32>
    %114 = vector.broadcast %7 : vector<24x1xf32> to vector<24x512xf32>
    %115 = arith.addf %113, %114 : vector<24x512xf32>
    %116 = vector.extract_strided_slice %115 {offsets = [0, 0], sizes = [16, 512], strides = [1, 1]} : vector<24x512xf32> to vector<16x512xf32>
    %117 = vector.extract_strided_slice %115 {offsets = [16, 0], sizes = [1, 512], strides = [1, 1]} : vector<24x512xf32> to vector<1x512xf32>
    %cst_41 = arith.constant 0.000000e+00 : f32
    %118 = vector.broadcast %cst_41 : f32 to vector<1x512xf32>
    %119 = arith.maximumf %117, %118 : vector<1x512xf32>
    %cst_42 = arith.constant 0.000000e+00 : f32
    %120 = vector.broadcast %cst_42 : f32 to vector<1x512xf32>
    %121 = arith.subf %120, %119 : vector<1x512xf32>
    %cst_43 = arith.constant 1.875000e-01 : f32
    %122 = vector.broadcast %cst_43 : f32 to vector<1x512xf32>
    %123 = arith.mulf %121, %122 : vector<1x512xf32>
    %124 = math.exp %123 : vector<1x512xf32>
    %cst_44 = arith.constant 1.000000e+00 : f32
    %125 = vector.broadcast %cst_44 : f32 to vector<1x512xf32>
    %126 = arith.subf %125, %124 : vector<1x512xf32>
    %127 = vector.extract_strided_slice %126 {offsets = [0, 0], sizes = [1, 256], strides = [1, 1]} : vector<1x512xf32> to vector<1x256xf32>
    %128 = vector.extract_strided_slice %116 {offsets = [0, 0], sizes = [16, 256], strides = [1, 1]} : vector<16x512xf32> to vector<16x256xf32>
    %129 = arith.mulf %100, %127 : vector<1x256xf32>
    %130 = vector.broadcast %129 : vector<1x256xf32> to vector<16x256xf32>
    %131 = arith.mulf %130, %128 : vector<16x256xf32>
    %132 = arith.addf %97, %131 : vector<16x256xf32>
    %cst_45 = arith.constant 1.000000e+00 : f32
    %133 = vector.broadcast %cst_45 : f32 to vector<1x256xf32>
    %134 = arith.subf %133, %127 : vector<1x256xf32>
    %135 = arith.mulf %100, %134 : vector<1x256xf32>
    %136 = vector.extract_strided_slice %126 {offsets = [0, 256], sizes = [1, 256], strides = [1, 1]} : vector<1x512xf32> to vector<1x256xf32>
    %137 = vector.extract_strided_slice %116 {offsets = [0, 256], sizes = [16, 256], strides = [1, 1]} : vector<16x512xf32> to vector<16x256xf32>
    %138 = arith.mulf %135, %136 : vector<1x256xf32>
    %139 = vector.broadcast %138 : vector<1x256xf32> to vector<16x256xf32>
    %140 = arith.mulf %139, %137 : vector<16x256xf32>
    %141 = arith.addf %132, %140 : vector<16x256xf32>
    %cst_46 = arith.constant 1.000000e+00 : f32
    %142 = vector.broadcast %cst_46 : f32 to vector<1x256xf32>
    %143 = arith.subf %142, %136 : vector<1x256xf32>
    %144 = arith.mulf %135, %143 : vector<1x256xf32>
    %c0_47 = arith.constant 0 : index
    %c1536 = arith.constant 1536 : index
    %145 = vector.load %arg1[%c0_47, %c1536] : memref<32x2048xf32, #tpu.memory_space<vmem>>, vector<32x512xf32>
    %146 = vector.broadcast %10 : vector<32x1xf32> to vector<32x512xf32>
    %147 = arith.addf %145, %146 : vector<32x512xf32>
    %cst_48 = arith.constant 0.000000e+00 : f32
    %148 = vector.broadcast %cst_48 : f32 to vector<32x512xf32>
    %149 = arith.maximumf %147, %148 : vector<32x512xf32>
    %150 = arith.truncf %149 : vector<32x512xf32> to vector<32x512xbf16>
    %cst_49 = arith.constant dense<0.000000e+00> : vector<32x512xf32>
    %151 = tpu.matmul %1, %150, %cst_49 {dimension_numbers = #tpu.dot_dimension_numbers<[1], [0], [0], [1], [0, 0, 1, 1], [], []>} : vector<32x32xbf16>, vector<32x512xbf16>, vector<32x512xf32> -> vector<32x512xf32>
    %152 = vector.broadcast %6 : vector<32x1xf32> to vector<32x512xf32>
    %153 = arith.addf %151, %152 : vector<32x512xf32>
    %cst_50 = arith.constant 0.000000e+00 : f32
    %154 = vector.broadcast %cst_50 : f32 to vector<32x512xf32>
    %155 = arith.maximumf %153, %154 : vector<32x512xf32>
    %156 = arith.truncf %155 : vector<32x512xf32> to vector<32x512xbf16>
    %cst_51 = arith.constant dense<0.000000e+00> : vector<24x512xf32>
    %157 = tpu.matmul %3, %156, %cst_51 {dimension_numbers = #tpu.dot_dimension_numbers<[1], [0], [0], [1], [0, 0, 1, 1], [], []>} : vector<24x32xbf16>, vector<32x512xbf16>, vector<24x512xf32> -> vector<24x512xf32>
    %158 = vector.broadcast %7 : vector<24x1xf32> to vector<24x512xf32>
    %159 = arith.addf %157, %158 : vector<24x512xf32>
    %160 = vector.extract_strided_slice %159 {offsets = [0, 0], sizes = [16, 512], strides = [1, 1]} : vector<24x512xf32> to vector<16x512xf32>
    %161 = vector.extract_strided_slice %159 {offsets = [16, 0], sizes = [1, 512], strides = [1, 1]} : vector<24x512xf32> to vector<1x512xf32>
    %cst_52 = arith.constant 0.000000e+00 : f32
    %162 = vector.broadcast %cst_52 : f32 to vector<1x512xf32>
    %163 = arith.maximumf %161, %162 : vector<1x512xf32>
    %cst_53 = arith.constant 0.000000e+00 : f32
    %164 = vector.broadcast %cst_53 : f32 to vector<1x512xf32>
    %165 = arith.subf %164, %163 : vector<1x512xf32>
    %cst_54 = arith.constant 1.875000e-01 : f32
    %166 = vector.broadcast %cst_54 : f32 to vector<1x512xf32>
    %167 = arith.mulf %165, %166 : vector<1x512xf32>
    %168 = math.exp %167 : vector<1x512xf32>
    %cst_55 = arith.constant 1.000000e+00 : f32
    %169 = vector.broadcast %cst_55 : f32 to vector<1x512xf32>
    %170 = arith.subf %169, %168 : vector<1x512xf32>
    %171 = vector.extract_strided_slice %170 {offsets = [0, 0], sizes = [1, 256], strides = [1, 1]} : vector<1x512xf32> to vector<1x256xf32>
    %172 = vector.extract_strided_slice %160 {offsets = [0, 0], sizes = [16, 256], strides = [1, 1]} : vector<16x512xf32> to vector<16x256xf32>
    %173 = arith.mulf %144, %171 : vector<1x256xf32>
    %174 = vector.broadcast %173 : vector<1x256xf32> to vector<16x256xf32>
    %175 = arith.mulf %174, %172 : vector<16x256xf32>
    %176 = arith.addf %141, %175 : vector<16x256xf32>
    %cst_56 = arith.constant 1.000000e+00 : f32
    %177 = vector.broadcast %cst_56 : f32 to vector<1x256xf32>
    %178 = arith.subf %177, %171 : vector<1x256xf32>
    %179 = arith.mulf %144, %178 : vector<1x256xf32>
    %180 = vector.extract_strided_slice %170 {offsets = [0, 256], sizes = [1, 256], strides = [1, 1]} : vector<1x512xf32> to vector<1x256xf32>
    %181 = vector.extract_strided_slice %160 {offsets = [0, 256], sizes = [16, 256], strides = [1, 1]} : vector<16x512xf32> to vector<16x256xf32>
    %182 = arith.mulf %179, %180 : vector<1x256xf32>
    %183 = vector.broadcast %182 : vector<1x256xf32> to vector<16x256xf32>
    %184 = arith.mulf %183, %181 : vector<16x256xf32>
    %185 = arith.addf %176, %184 : vector<16x256xf32>
    %186 = arith.truncf %185 : vector<16x256xf32> to vector<16x256xbf16>
    %cst_57 = arith.constant dense<0.000000e+00> : vector<8x256xf32>
    %187 = tpu.matmul %5, %186, %cst_57 {dimension_numbers = #tpu.dot_dimension_numbers<[1], [0], [0], [1], [0, 0, 1, 1], [], []>} : vector<8x16xbf16>, vector<16x256xbf16>, vector<8x256xf32> -> vector<8x256xf32>
    %188 = vector.broadcast %8 : vector<8x1xf32> to vector<8x256xf32>
    %189 = arith.addf %187, %188 : vector<8x256xf32>
    %190 = arith.negf %189 : vector<8x256xf32>
    %191 = math.exp %190 : vector<8x256xf32>
    %cst_58 = arith.constant 1.000000e+00 : f32
    %192 = vector.broadcast %cst_58 : f32 to vector<8x256xf32>
    %193 = arith.addf %192, %191 : vector<8x256xf32>
    %194 = arith.divf %192, %193 : vector<8x256xf32>
    %c0_59 = arith.constant 0 : index
    %c0_60 = arith.constant 0 : index
    %c0_61 = arith.constant 0 : index
    %195 = vector.load %arg6[%c0_59, %c0_60, %c0_61] : memref<1x8x256xf32, #tpu.memory_space<vmem>>, vector<1x8x256xf32>
    %196 = vector.shape_cast %195 : vector<1x8x256xf32> to vector<8x256xf32>
    %197 = vector.shape_cast %194 : vector<8x256xf32> to vector<1x8x256xf32>
    tpu.vector_store %arg6[%c0_59, %c0_60, %c0_61], %197 {strides = array<i32>} : memref<1x8x256xf32, #tpu.memory_space<vmem>>, vector<1x8x256xf32>,
    return
  }
  func.func @transform_0(%arg0: i32) -> (i32, i32) {
    %c0_i32 = arith.constant 0 : i32
    %c0_i32_0 = arith.constant 0 : i32
    %c0_i32_1 = arith.constant 0 : i32
    return %c0_i32, %c0_i32_0 : i32, i32
  }
  func.func @transform_1(%arg0: i32) -> (i32, i32, i32) {
    %c0_i32 = arith.constant 0 : i32
    %c0_i32_0 = arith.constant 0 : i32
    %c0_i32_1 = arith.constant 0 : i32
    return %arg0, %c0_i32, %c0_i32_0 : i32, i32, i32
  }
  func.func @transform_2(%arg0: i32) -> (i32, i32) {
    %c0_i32 = arith.constant 0 : i32
    %c0_i32_0 = arith.constant 0 : i32
    %c0_i32_1 = arith.constant 0 : i32
    return %c0_i32, %c0_i32_0 : i32, i32
  }
  func.func @transform_3(%arg0: i32) -> (i32, i32) {
    %c0_i32 = arith.constant 0 : i32
    %c0_i32_0 = arith.constant 0 : i32
    %c0_i32_1 = arith.constant 0 : i32
    return %c0_i32, %c0_i32_0 : i32, i32
  }
  func.func @transform_4(%arg0: i32) -> (i32, i32) {
    %c0_i32 = arith.constant 0 : i32
    %c0_i32_0 = arith.constant 0 : i32
    %c0_i32_1 = arith.constant 0 : i32
    return %c0_i32, %c0_i32_0 : i32, i32
  }
  func.func @transform_5(%arg0: i32) -> (i32, i32, i32) {
    %c0_i32 = arith.constant 0 : i32
    %c0_i32_0 = arith.constant 0 : i32
    %c0_i32_1 = arith.constant 0 : i32
    return %arg0, %c0_i32, %c0_i32_0 : i32, i32, i32
  }
}

</mosaic_0001>

<llo_original>
// kernel: generator_forward.1
$region0: #{generator_forward.1}
  #allocation0 [shape = 'u32[]', space=smem, size = 0x4, offset = 0x4, fixed_abs, tag = 'smem constant byte address 0x4 - core index']
  #allocation1 [shape = 'u32[144,128]{1,0:T(1,128)}', space=vmem, size = 0x12000, scoped, tag = 'internal scratch']
  %s0 = inlined_call_operand.vmem [shape: f32[32,2048], index: 0, kind: input, shape index: {}]
  %s1 = inlined_call_operand.vmem [shape: f32[2,32,1], index: 1, kind: input, shape index: {}]
  %s2 = inlined_call_operand.vmem [shape: f32[56,32], index: 2, kind: input, shape index: {}]
  %s3 = inlined_call_operand.vmem [shape: f32[8,16], index: 3, kind: input, shape index: {}]
  %s4 = inlined_call_operand.vmem [shape: f32[64,1], index: 4, kind: input, shape index: {}]
  %s5 = inlined_call_operand.vmem [shape: f32[2,8,256], index: 5, kind: output, shape index: {}]
  %s6 = sld [smem:[#allocation0]]
  $region53: #{generator_forward.1} parent=0
    _
  %s8 = ssub.s32 1, %s6
  %s9 = scalar_select 0, %s8, %s6
  loop: start=0, step=1, limit=4
  $region2: #{generator_forward.1} parent=0 // loop_pre_header
    _
  $region3: #{generator_forward.1} parent=0 // loop_header
    %s11 = sphi 0, %s15
    %p12 = scmp.ge.s32.totalorder %s11, 4
    %s19 = sphi 0, %s19
    %s21 = sphi 0, %s19
    %s22 = sphi 0, %s21
    %s36 = sphi 0, %s22
    %s42 = sphi 0, %s44
    %s45 = sphi 0, %s42
    %s46 = sphi 0, %s45
    %s62 = sphi 0, %s46
    %s66 = sphi 0, %s66
    %s68 = sphi 0, %s66
    %s69 = sphi 0, %s68
    %s83 = sphi 0, %s69
    %s87 = sphi 0, %s87
    %s89 = sphi 0, %s87
    %s90 = sphi 0, %s89
    %s104 = sphi 0, %s90
    %s108 = sphi 0, %s108
    %s110 = sphi 0, %s108
    %s111 = sphi 0, %s110
    %s125 = sphi 0, %s111
    %s131 = sphi 0, %s133
    %s134 = sphi 0, %s131
    %s135 = sphi 0, %s134
    %s151 = sphi 0, %s135
  $region4: #{generator_forward.1} parent=0 // loop_header_branch
    %14 = sbr.rel (%p12) target = $region8
  $region5: #{generator_forward.1} parent=0 // loop_body
    %s16 = ssub.s32 %s11, 1
    %s17 = ssub.s32 %s11, 2
    %s18 = sadd.s32 %s11, 1
    %s20 = sadd.s32 %s19, 1
    %p23 = scmp.eq.s32.totalorder %s11, 1
    %p24 = scmp.ne.s32.totalorder %s19, %s21
    %p25 = scmp.eq.s32.totalorder %s11, 0
    %p26 = por %p24, %p25
    %p27 = scmp.ne.s32.totalorder %s19, %s21
    %p28 = scmp.eq.s32.totalorder %s16, 1
    %p29 = por %p27, %p28
    %p30 = scmp.ne.s32.totalorder %s21, %s22
    %p31 = scmp.eq.s32.totalorder %s16, 0
    %p32 = por %p30, %p31
    %p33 = scmp.ne.s32.totalorder %s21, %s22
    %p34 = scmp.eq.s32.totalorder %s17, 1
    %p35 = por %p33, %p34
    %p37 = scmp.ne.s32.totalorder %s22, %s36
    %p38 = scmp.eq.s32.totalorder %s17, 0
    %p39 = por %p37, %p38
    %s40 = ssub.s32 %s11, %s18
    %p41 = scmp.eq.s32.totalorder %s40, 0
    %s43 = sadd.s32 %s42, 1
    %s44 = scalar_select %p41, %s42, %s43
    %p47 = pneg %p41
    %p48 = scmp.eq.s32.totalorder %s11, 1
    %p49 = por %p47, %p48
    %p50 = scmp.ne.s32.totalorder %s42, %s45
    %p51 = scmp.eq.s32.totalorder %s11, 0
    %p52 = por %p50, %p51
    %p53 = scmp.ne.s32.totalorder %s42, %s45
    %p54 = scmp.eq.s32.totalorder %s16, 1
    %p55 = por %p53, %p54
    %p56 = scmp.ne.s32.totalorder %s45, %s46
    %p57 = scmp.eq.s32.totalorder %s16, 0
    %p58 = por %p56, %p57
    %p59 = scmp.ne.s32.totalorder %s45, %s46
    %p60 = scmp.eq.s32.totalorder %s17, 1
    %p61 = por %p59, %p60
    %p63 = scmp.ne.s32.totalorder %s46, %s62
    %p64 = scmp.eq.s32.totalorder %s17, 0
    %p65 = por %p63, %p64
    %s67 = sadd.s32 %s66, 1
    %p70 = scmp.eq.s32.totalorder %s11, 1
    %p71 = scmp.ne.s32.totalorder %s66, %s68
    %p72 = scmp.eq.s32.totalorder %s11, 0
    %p73 = por %p71, %p72
    %p74 = scmp.ne.s32.totalorder %s66, %s68
    %p75 = scmp.eq.s32.totalorder %s16, 1
    %p76 = por %p74, %p75
    %p77 = scmp.ne.s32.totalorder %s68, %s69
    %p78 = scmp.eq.s32.totalorder %s16, 0
    %p79 = por %p77, %p78
    %p80 = scmp.ne.s32.totalorder %s68, %s69
    %p81 = scmp.eq.s32.totalorder %s17, 1
    %p82 = por %p80, %p81
    %p84 = scmp.ne.s32.totalorder %s69, %s83
    %p85 = scmp.eq.s32.totalorder %s17, 0
    %p86 = por %p84, %p85
    %s88 = sadd.s32 %s87, 1
    %p91 = scmp.eq.s32.totalorder %s11, 1
    %p92 = scmp.ne.s32.totalorder %s87, %s89
    %p93 = scmp.eq.s32.totalorder %s11, 0
    %p94 = por %p92, %p93
    %p95 = scmp.ne.s32.totalorder %s87, %s89
    %p96 = scmp.eq.s32.totalorder %s16, 1
    %p97 = por %p95, %p96
    %p98 = scmp.ne.s32.totalorder %s89, %s90
    %p99 = scmp.eq.s32.totalorder %s16, 0
    %p100 = por %p98, %p99
    %p101 = scmp.ne.s32.totalorder %s89, %s90
    %p102 = scmp.eq.s32.totalorder %s17, 1
    %p103 = por %p101, %p102
    %p105 = scmp.ne.s32.totalorder %s90, %s104
    %p106 = scmp.eq.s32.totalorder %s17, 0
    %p107 = por %p105, %p106
    %s109 = sadd.s32 %s108, 1
    %p112 = scmp.eq.s32.totalorder %s11, 1
    %p113 = scmp.ne.s32.totalorder %s108, %s110
    %p114 = scmp.eq.s32.totalorder %s11, 0
    %p115 = por %p113, %p114
    %p116 = scmp.ne.s32.totalorder %s108, %s110
    %p117 = scmp.eq.s32.totalorder %s16, 1
    %p118 = por %p116, %p117
    %p119 = scmp.ne.s32.totalorder %s110, %s111
    %p120 = scmp.eq.s32.totalorder %s16, 0
    %p121 = por %p119, %p120
    %p122 = scmp.ne.s32.totalorder %s110, %s111
    %p123 = scmp.eq.s32.totalorder %s17, 1
    %p124 = por %p122, %p123
    %p126 = scmp.ne.s32.totalorder %s111, %s125
    %p127 = scmp.eq.s32.totalorder %s17, 0
    %p128 = por %p126, %p127
    %s129 = ssub.s32 %s11, %s18
    %p130 = scmp.eq.s32.totalorder %s129, 0
    %s132 = sadd.s32 %s131, 1
    %s133 = scalar_select %p130, %s131, %s132
    %p136 = pneg %p130
    %p137 = scmp.eq.s32.totalorder %s11, 1
    %p138 = por %p136, %p137
    %p139 = scmp.ne.s32.totalorder %s131, %s134
    %p140 = scmp.eq.s32.totalorder %s11, 0
    %p141 = por %p139, %p140
    %p142 = scmp.ne.s32.totalorder %s131, %s134
    %p143 = scmp.eq.s32.totalorder %s16, 1
    %p144 = por %p142, %p143
    %p145 = scmp.ne.s32.totalorder %s134, %s135
    %p146 = scmp.eq.s32.totalorder %s16, 0
    %p147 = por %p145, %p146
    %p148 = scmp.ne.s32.totalorder %s134, %s135
    %p149 = scmp.eq.s32.totalorder %s17, 1
    %p150 = por %p148, %p149
    %p152 = scmp.ne.s32.totalorder %s135, %s151
    %p153 = scmp.eq.s32.totalorder %s17, 0
    %p154 = por %p152, %p153
    %p155 = scmp.le.s32.totalorder 1, %s11
    %p156 = scmp.lt.s32.totalorder %s11, 3
    %p157 = pnand %p155, %p156
    %p158 = pneg %p157
    // Predicated region
    $region9: #{generator_forward.1} parent=5 // pred_check
      _
    $region10: #{generator_forward.1} parent=5 // pred_check_branch
      %160 = sbr.rel (%p157) target = $region12
    $region11: #{generator_forward.1} parent=5 // pred_region
      %s161 = ssub.s32 %s11, 1
      // Predicated region
      $region13: #{generator_forward.1} parent=11 // pred_check
        %p162 = pneg %p32
      $region14: #{generator_forward.1} parent=11 // pred_check_branch
        %164 = sbr.rel (%p162) target = $region16
      $region15: #{generator_forward.1} parent=11 // pred_region
        _
      $region16: #{generator_forward.1} parent=11 // pred_fallthru
        _
      // Predicated region
      $region17: #{generator_forward.1} parent=11 // pred_check
        %p165 = pneg %p79
      $region18: #{generator_forward.1} parent=11 // pred_check_branch
        %167 = sbr.rel (%p165) target = $region20
      $region19: #{generator_forward.1} parent=11 // pred_region
        _
      $region20: #{generator_forward.1} parent=11 // pred_fallthru
        _
      // Predicated region
      $region21: #{generator_forward.1} parent=11 // pred_check
        %p168 = pneg %p100
      $region22: #{generator_forward.1} parent=11 // pred_check_branch
        %170 = sbr.rel (%p168) target = $region24
      $region23: #{generator_forward.1} parent=11 // pred_region
        _
      $region24: #{generator_forward.1} parent=11 // pred_fallthru
        _
      // Predicated region
      $region25: #{generator_forward.1} parent=11 // pred_check
        %p171 = pneg %p121
      $region26: #{generator_forward.1} parent=11 // pred_check_branch
        %173 = sbr.rel (%p171) target = $region28
      $region27: #{generator_forward.1} parent=11 // pred_region
        _
      $region28: #{generator_forward.1} parent=11 // pred_fallthru
        _
    $region12: #{generator_forward.1} parent=5 // pred_fallthru
      _
    %p174 = scmp.lt.s32.totalorder %s11, 2
    // Predicated region
    $region29: #{generator_forward.1} parent=5 // pred_check
      %p175 = pneg %p174
    $region30: #{generator_forward.1} parent=5 // pred_check_branch
      %177 = sbr.rel (%p175) target = $region32
    $region31: #{generator_forward.1} parent=5 // pred_region
      // Predicated region
      $region33: #{generator_forward.1} parent=31 // pred_check
        %p178 = pneg %p52
      $region34: #{generator_forward.1} parent=31 // pred_check_branch
        %180 = sbr.rel (%p178) target = $region36
      $region35: #{generator_forward.1} parent=31 // pred_region
        %p181 = scmp.lt.s32.totalorder %s11, 1
        %s182 = scalar_select %p181, %s11, 1
        %s183 = smul.addr %s182, 4
        %s184 = smul.addr %s183, 8
        %s185 = scalar_lea.vmem %s1, %s184
      $region36: #{generator_forward.1} parent=31 // pred_fallthru
        _
    $region32: #{generator_forward.1} parent=5 // pred_fallthru
      _
    %p186 = scmp.le.s32.totalorder 1, %s11
    %p187 = scmp.lt.s32.totalorder %s11, 3
    %p188 = pnand %p186, %p187
    %p189 = pneg %p188
    // Predicated region
    $region37: #{generator_forward.1} parent=5 // pred_check
      _
    $region38: #{generator_forward.1} parent=5 // pred_check_branch
      %191 = sbr.rel (%p188) target = $region40
    $region39: #{generator_forward.1} parent=5 // pred_region
      %s192 = ssub.s32 %s11, 1
      %p193 = pneg %p32
      %p194 = pneg %p29
      %p195 = scmp.lt.s32.totalorder %s16, 1
      %s196 = scalar_select %p195, %s16, 1
      %s197 = smul.addr %s196, 4
      %s198 = smul.addr %s197, 8
      %s199 = scalar_lea.vmem %s1, %s198
      %p200 = pneg %p58
      %p201 = pneg %p55
      %p202 = pneg %p79
      %p203 = pneg %p76
      %p204 = pneg %p100
      %p205 = pneg %p97
      %p206 = pneg %p121
      %p207 = pneg %p118
      %p208 = pneg %p147
      %p209 = pneg %p144
      %p210 = scmp.lt.s32.totalorder %s16, 1
      %s211 = scalar_select %p210, %s16, 1
      %s212 = smul.addr %s211, 2
      %s213 = smul.addr %s212, 8
      %s214 = scalar_lea.vmem %s5, %s213
      %p215 = scmp.lt.s32.totalorder %s16, 1
      %s216 = scalar_select %p215, %s16, 1
      %s217 = smul.addr %s216, 4
      %s218 = smul.addr %s217, 8
      %s219 = scalar_lea.vmem %s1, %s218
      %p220 = scmp.lt.s32.totalorder %s16, 1
      %s221 = scalar_select %p220, %s16, 1
      %s222 = smul.addr %s221, 2
      %s223 = smul.addr %s222, 8
      %s224 = scalar_lea.vmem %s5, %s223
      %v226 = vld [vmem:[%s2] sm:$0xff]
      %v227 = vld [vmem:[%s2 + $0x8] sm:$0xff]
      %v228 = vld [vmem:[%s2 + $0x10] sm:$0xff]
      %v229 = vld [vmem:[%s2 + $0x18] sm:$0xff]
      %v230 = vpack.c.bf16 %v227, %v226
      %v231 = vpack.c.bf16 %v229, %v228
      %v232 = vld [vmem:[%s2 + $0x20] sm:$0xff]
      %v233 = vld [vmem:[%s2 + $0x28] sm:$0xff]
      %v234 = vld [vmem:[%s2 + $0x30] sm:$0xff]
      %v235 = vpack.c.bf16 %v233, %v232
      %v236 = vpack.c.bf16 %v234, %v234
      %v237 = vld [vmem:[%s3] sm:$0xff]
      %v238 = vpack.c.bf16 %v237, %v237
      %v239 = vld [vmem:[%s4] sm:$0xff]
      %v240 = vld [vmem:[%s4 + $0x8] sm:$0xff]
      %v241 = vld [vmem:[%s4 + $0x10] sm:$0xff]
      %v242 = vld [vmem:[%s4 + $0x18] sm:$0xff]
      %v243 = vld [vmem:[%s4 + $0x20] sm:$0xff]
      %v244 = vld [vmem:[%s4 + $0x28] sm:$0xff]
      %v245 = vld [vmem:[%s4 + $0x30] sm:$0xff]
      %v246 = vld [vmem:[%s4 + $0x38] sm:$0xff]
      %v247 = vld [vmem:[%s219] sm:$0xff]
      %v248 = vld [vmem:[%s219 + $0x8] sm:$0xff]
      %v249 = vld [vmem:[%s219 + $0x10] sm:$0xff]
      %v250 = vld [vmem:[%s219 + $0x18] sm:$0xff]
      %v251 = vld [vmem:[%s0] sm:$0xff]
      %v252 = vld [vmem:[%s0 + $0x8] sm:$0xff]
      %v253 = vld [vmem:[%s0 + $0x10] sm:$0xff]
      %v254 = vld [vmem:[%s0 + $0x18] sm:$0xff]
      %v255 = vld [vmem:[%s0 + $0x80] sm:$0xff]
      %v256 = vld [vmem:[%s0 + $0x88] sm:$0xff]
      %v257 = vld [vmem:[%s0 + $0x90] sm:$0xff]
      %v258 = vld [vmem:[%s0 + $0x98] sm:$0xff]
      %v259 = vld [vmem:[%s0 + $0x100] sm:$0xff]
      %v260 = vld [vmem:[%s0 + $0x108] sm:$0xff]
      %v261 = vld [vmem:[%s0 + $0x110] sm:$0xff]
      %v262 = vld [vmem:[%s0 + $0x118] sm:$0xff]
      %v263 = vld [vmem:[%s0 + $0x180] sm:$0xff]
      %v264 = vld [vmem:[%s0 + $0x188] sm:$0xff]
      %v265 = vld [vmem:[%s0 + $0x190] sm:$0xff]
      %v266 = vld [vmem:[%s0 + $0x198] sm:$0xff]
      %268 = vset.pattern.permute.xlu0 0
      %269 = vperm.xlu0 %268, %v247
      %v270 = vpop.permute.xlu0 %269
      %273 = vset.pattern.permute.xlu0 0
      %274 = vperm.xlu0 %273, %v248
      %v275 = vpop.permute.xlu0 %274
      %278 = vset.pattern.permute.xlu0 0
      %279 = vperm.xlu0 %278, %v249
      %v280 = vpop.permute.xlu0 %279
      %283 = vset.pattern.permute.xlu0 0
      %284 = vperm.xlu0 %283, %v250
      %v285 = vpop.permute.xlu0 %284
      %v287 = vadd.f32 %v251, %v270
      %v288 = vadd.f32 %v252, %v270
      %v289 = vadd.f32 %v253, %v270
      %v290 = vadd.f32 %v254, %v270
      %v291 = vadd.f32 %v255, %v275
      %v292 = vadd.f32 %v256, %v275
      %v293 = vadd.f32 %v257, %v275
      %v294 = vadd.f32 %v258, %v275
      %v295 = vadd.f32 %v259, %v280
      %v296 = vadd.f32 %v260, %v280
      %v297 = vadd.f32 %v261, %v280
      %v298 = vadd.f32 %v262, %v280
      %v299 = vadd.f32 %v263, %v285
      %v300 = vadd.f32 %v264, %v285
      %v301 = vadd.f32 %v265, %v285
      %v302 = vadd.f32 %v266, %v285
      %v303 = vmax.f32 %v287, 0.0
      %v304 = vmax.f32 %v288, 0.0
      %v305 = vmax.f32 %v289, 0.0
      %v306 = vmax.f32 %v290, 0.0
      %v307 = vmax.f32 %v291, 0.0
      %v308 = vmax.f32 %v292, 0.0
      %v309 = vmax.f32 %v293, 0.0
      %v310 = vmax.f32 %v294, 0.0
      %v311 = vmax.f32 %v295, 0.0
      %v312 = vmax.f32 %v296, 0.0
      %v313 = vmax.f32 %v297, 0.0
      %v314 = vmax.f32 %v298, 0.0
      %v315 = vmax.f32 %v299, 0.0
      %v316 = vmax.f32 %v300, 0.0
      %v317 = vmax.f32 %v301, 0.0
      %v318 = vmax.f32 %v302, 0.0
      %v319 = vpack.c.bf16 %v307, %v303
      %v320 = vpack.c.bf16 %v308, %v304
      %v321 = vpack.c.bf16 %v309, %v305
      %v322 = vpack.c.bf16 %v310, %v306
      %v323 = vpack.c.bf16 %v315, %v311
      %v324 = vpack.c.bf16 %v316, %v312
      %v325 = vpack.c.bf16 %v317, %v313
      %v326 = vpack.c.bf16 %v318, %v314
      %328 = vset.pattern.permute.xlu0 0
      %329 = vperm.xlu0 %328, %v239
      %v330 = vpop.permute.xlu0 %329
      %333 = vset.pattern.permute.xlu0 0
      %334 = vperm.xlu0 %333, %v240
      %v335 = vpop.permute.xlu0 %334
      %338 = vset.pattern.permute.xlu0 0
      %339 = vperm.xlu0 %338, %v241
      %v340 = vpop.permute.xlu0 %339
      %343 = vset.pattern.permute.xlu0 0
      %344 = vperm.xlu0 %343, %v242
      %v345 = vpop.permute.xlu0 %344
      %vm347 = vcmask 261120
      %v349 = vsel %vm347, %v230, 0
      %v352 = vsel %vm347, %v231, 0
      %354 = vmatprep.subr.bf16.mxu0 %v320
      %355 = vmatpush1.bf16.msra.mxu0 %v319
      %356 = vmatprep.subr.bf16.mxu0 %v324
      %357 = vmatpush1.bf16.msra.mxu0 %v323
      %358 = vmatprep.subr.bf16.mxu0 0
      %359 = vmatpush1.bf16.msra.mxu0 0
      %360 = vmatprep.subr.bf16.mxu0 0
      %361 = vmatpush1.bf16.msra.mxu0 0
      %362 = vmatprep.subr.bf16.mxu0 0
      %363 = vmatpush1.bf16.msra.mxu0 0
      %364 = vmatprep.subr.bf16.mxu0 0
      %365 = vmatpush1.bf16.msra.mxu0 0
      %366 = vmatprep.subr.bf16.mxu0 0
      %367 = vmatpush1.bf16.msra.mxu0 0
      %368 = vmatprep.subr.bf16.mxu0 0
      %369 = vmatpush1.bf16.msra.mxu0 0
      %370 = vmatprep.subr.bf16.mxu0 0
      %371 = vmatpush1.bf16.msra.mxu0 0
      %372 = vmatprep.subr.bf16.mxu0 0
      %373 = vmatpush1.bf16.msra.mxu0 0
      %374 = vmatprep.subr.bf16.mxu0 0
      %375 = vmatpush1.bf16.msra.mxu0 0
      %376 = vmatprep.subr.bf16.mxu0 0
      %377 = vmatpush1.bf16.msra.mxu0 0
      %378 = vmatprep.subr.bf16.mxu0 0
      %379 = vmatpush1.bf16.msra.mxu0 0
      %380 = vmatprep.subr.bf16.mxu0 0
      %381 = vmatpush1.bf16.msra.mxu0 0
      %382 = vmatprep.subr.bf16.mxu0 0
      %383 = vmatpush1.bf16.msra.mxu0 0
      %384 = vmatprep.subr.bf16.mxu0 0
      %385 = vmatpush1.bf16.msra.mxu0 0
      %386 = vmatprep.mubr.bf16.mxu0 0
      %387 = vmatmul.mubr.bf16.gmra.mrb[0].mxu0 %v349
      %v388 = vpop.f32.mrb[0].mxu0
      %v389 = vadd.f32 %v330, %v388
      %v390 = vpop.f32.mrb[0].mxu0
      %v391 = vadd.f32 %v330, %v390
      %v392 = vpop.f32.mrb[0].mxu0
      %v393 = vadd.f32 %v335, %v392
      %v394 = vpop.f32.mrb[0].mxu0
      %v395 = vadd.f32 %v335, %v394
      %396 = vmatprep.mubr.bf16.mxu0 0
      %397 = vmatmul.mubr.bf16.gmra.mrb[0].mxu0 %v352
      %v398 = vpop.f32.mrb[0].mxu0
      %v399 = vadd.f32 %v340, %v398
      %v400 = vpop.f32.mrb[0].mxu0
      %v401 = vadd.f32 %v340, %v400
      %v402 = vpop.f32.mrb[0].mxu0
      %v403 = vadd.f32 %v345, %v402
      %v404 = vpop.f32.mrb[0].mxu0
      %v405 = vadd.f32 %v345, %v404
      %406 = vdwg.mxu0
      %407 = vmatprep.subr.bf16.mxu0 %v322
      %408 = vmatpush1.bf16.msra.mxu0 %v321
      %409 = vmatprep.subr.bf16.mxu0 %v326
      %410 = vmatpush1.bf16.msra.mxu0 %v325
      %411 = vmatprep.subr.bf16.mxu0 0
      %412 = vmatpush1.bf16.msra.mxu0 0
      %413 = vmatprep.subr.bf16.mxu0 0
      %414 = vmatpush1.bf16.msra.mxu0 0
      %415 = vmatprep.subr.bf16.mxu0 0
      %416 = vmatpush1.bf16.msra.mxu0 0
      %417 = vmatprep.subr.bf16.mxu0 0
      %418 = vmatpush1.bf16.msra.mxu0 0
      %419 = vmatprep.subr.bf16.mxu0 0
      %420 = vmatpush1.bf16.msra.mxu0 0
      %421 = vmatprep.subr.bf16.mxu0 0
      %422 = vmatpush1.bf16.msra.mxu0 0
      %423 = vmatprep.subr.bf16.mxu0 0
      %424 = vmatpush1.bf16.msra.mxu0 0
      %425 = vmatprep.subr.bf16.mxu0 0
      %426 = vmatpush1.bf16.msra.mxu0 0
      %427 = vmatprep.subr.bf16.mxu0 0
      %428 = vmatpush1.bf16.msra.mxu0 0
      %429 = vmatprep.subr.bf16.mxu0 0
      %430 = vmatpush1.bf16.msra.mxu0 0
      %431 = vmatprep.subr.bf16.mxu0 0
      %432 = vmatpush1.bf16.msra.mxu0 0
      %433 = vmatprep.subr.bf16.mxu0 0
      %434 = vmatpush1.bf16.msra.mxu0 0
      %435 = vmatprep.subr.bf16.mxu0 0
      %436 = vmatpush1.bf16.msra.mxu0 0
      %437 = vmatprep.subr.bf16.mxu0 0
      %438 = vmatpush1.bf16.msra.mxu0 0
      %439 = vmatprep.mubr.bf16.mxu0 0
      %440 = vmatmul.mubr.bf16.gmra.mrb[0].mxu0 %v349
      %v441 = vpop.f32.mrb[0].mxu0
      %v442 = vadd.f32 %v330, %v441
      %v443 = vpop.f32.mrb[0].mxu0
      %v444 = vadd.f32 %v330, %v443
      %v445 = vpop.f32.mrb[0].mxu0
      %v446 = vadd.f32 %v335, %v445
      %v447 = vpop.f32.mrb[0].mxu0
      %v448 = vadd.f32 %v335, %v447
      %449 = vmatprep.mubr.bf16.mxu0 0
      %450 = vmatmul.mubr.bf16.gmra.mrb[0].mxu0 %v352
      %v451 = vpop.f32.mrb[0].mxu0
      %v452 = vadd.f32 %v340, %v451
      %v453 = vpop.f32.mrb[0].mxu0
      %v454 = vadd.f32 %v340, %v453
      %v455 = vpop.f32.mrb[0].mxu0
      %v456 = vadd.f32 %v345, %v455
      %v457 = vpop.f32.mrb[0].mxu0
      %v458 = vadd.f32 %v345, %v457
      %459 = vdwg.mxu0
      %v460 = vmax.f32 %v389, 0.0
      %v461 = vmax.f32 %v391, 0.0
      %v462 = vmax.f32 %v442, 0.0
      %v463 = vmax.f32 %v444, 0.0
      %v464 = vmax.f32 %v393, 0.0
      %v465 = vmax.f32 %v395, 0.0
      %v466 = vmax.f32 %v446, 0.0
      %v467 = vmax.f32 %v448, 0.0
      %v468 = vmax.f32 %v399, 0.0
      %v469 = vmax.f32 %v401, 0.0
      %v470 = vmax.f32 %v452, 0.0
      %v471 = vmax.f32 %v454, 0.0
      %v472 = vmax.f32 %v403, 0.0
      %v473 = vmax.f32 %v405, 0.0
      %v474 = vmax.f32 %v456, 0.0
      %v475 = vmax.f32 %v458, 0.0
      %v476 = vpack.c.bf16 %v464, %v460
      %v477 = vpack.c.bf16 %v465, %v461
      %v478 = vpack.c.bf16 %v466, %v462
      %v479 = vpack.c.bf16 %v467, %v463
      %v480 = vpack.c.bf16 %v472, %v468
      %v481 = vpack.c.bf16 %v473, %v469
      %v482 = vpack.c.bf16 %v474, %v470
      %v483 = vpack.c.bf16 %v475, %v471
      %485 = vset.pattern.permute.xlu0 0
      %486 = vperm.xlu0 %485, %v243
      %v487 = vpop.permute.xlu0 %486
      %490 = vset.pattern.permute.xlu0 0
      %491 = vperm.xlu0 %490, %v244
      %v492 = vpop.permute.xlu0 %491
      %495 = vset.pattern.permute.xlu0 0
      %496 = vperm.xlu0 %495, %v245
      %v497 = vpop.permute.xlu0 %496
      %v500 = vsel %vm347, %v235, 0
      %v503 = vsel %vm347, %v236, 0
      %505 = vmatprep.subr.bf16.mxu0 %v477
      %506 = vmatpush1.bf16.msra.mxu0 %v476
      %507 = vmatprep.subr.bf16.mxu0 %v481
      %508 = vmatpush1.bf16.msra.mxu0 %v480
      %509 = vmatprep.subr.bf16.mxu0 0
      %510 = vmatpush1.bf16.msra.mxu0 0
      %511 = vmatprep.subr.bf16.mxu0 0
      %512 = vmatpush1.bf16.msra.mxu0 0
      %513 = vmatprep.subr.bf16.mxu0 0
      %514 = vmatpush1.bf16.msra.mxu0 0
      %515 = vmatprep.subr.bf16.mxu0 0
      %516 = vmatpush1.bf16.msra.mxu0 0
      %517 = vmatprep.subr.bf16.mxu0 0
      %518 = vmatpush1.bf16.msra.mxu0 0
      %519 = vmatprep.subr.bf16.mxu0 0
      %520 = vmatpush1.bf16.msra.mxu0 0
      %521 = vmatprep.subr.bf16.mxu0 0
      %522 = vmatpush1.bf16.msra.mxu0 0
      %523 = vmatprep.subr.bf16.mxu0 0
      %524 = vmatpush1.bf16.msra.mxu0 0
      %525 = vmatprep.subr.bf16.mxu0 0
      %526 = vmatpush1.bf16.msra.mxu0 0
      %527 = vmatprep.subr.bf16.mxu0 0
      %528 = vmatpush1.bf16.msra.mxu0 0
      %529 = vmatprep.subr.bf16.mxu0 0
      %530 = vmatpush1.bf16.msra.mxu0 0
      %531 = vmatprep.subr.bf16.mxu0 0
      %532 = vmatpush1.bf16.msra.mxu0 0
      %533 = vmatprep.subr.bf16.mxu0 0
      %534 = vmatpush1.bf16.msra.mxu0 0
      %535 = vmatprep.subr.bf16.mxu0 0
      %536 = vmatpush1.bf16.msra.mxu0 0
      %537 = vmatprep.mubr.bf16.mxu0 0
      %538 = vmatmul.mubr.bf16.gmra.mrb[0].mxu0 %v500
      %v539 = vpop.f32.mrb[0].mxu0
      %v540 = vadd.f32 %v487, %v539
      %v541 = vpop.f32.mrb[0].mxu0
      %v542 = vadd.f32 %v487, %v541
      %v543 = vpop.f32.mrb[0].mxu0
      %v544 = vadd.f32 %v492, %v543
      %v545 = vpop.f32.mrb[0].mxu0
      %v546 = vadd.f32 %v492, %v545
      %547 = vmatprep.mubr.bf16.mxu0 0
      %548 = vmatmul.mubr.bf16.gmra.mrb[0].mxu0 %v503
      %v549 = vpop.f32.mrb[0].mxu0
      %v550 = vadd.f32 %v497, %v549
      %v551 = vpop.f32.mrb[0].mxu0
      %v552 = vadd.f32 %v497, %v551
      %v553 = vpop.f32.mrb[0].mxu0
      %v554 = vpop.f32.mrb[0].mxu0
      %555 = vdwg.mxu0
      %556 = vmatprep.subr.bf16.mxu0 %v479
      %557 = vmatpush1.bf16.msra.mxu0 %v478
      %558 = vmatprep.subr.bf16.mxu0 %v483
      %559 = vmatpush1.bf16.msra.mxu0 %v482
      %560 = vmatprep.subr.bf16.mxu0 0
      %561 = vmatpush1.bf16.msra.mxu0 0
      %562 = vmatprep.subr.bf16.mxu0 0
      %563 = vmatpush1.bf16.msra.mxu0 0
      %564 = vmatprep.subr.bf16.mxu0 0
      %565 = vmatpush1.bf16.msra.mxu0 0
      %566 = vmatprep.subr.bf16.mxu0 0
      %567 = vmatpush1.bf16.msra.mxu0 0
      %568 = vmatprep.subr.bf16.mxu0 0
      %569 = vmatpush1.bf16.msra.mxu0 0
      %570 = vmatprep.subr.bf16.mxu0 0
      %571 = vmatpush1.bf16.msra.mxu0 0
      %572 = vmatprep.subr.bf16.mxu0 0
      %573 = vmatpush1.bf16.msra.mxu0 0
      %574 = vmatprep.subr.bf16.mxu0 0
      %575 = vmatpush1.bf16.msra.mxu0 0
      %576 = vmatprep.subr.bf16.mxu0 0
      %577 = vmatpush1.bf16.msra.mxu0 0
      %578 = vmatprep.subr.bf16.mxu0 0
      %579 = vmatpush1.bf16.msra.mxu0 0
      %580 = vmatprep.subr.bf16.mxu0 0
      %581 = vmatpush1.bf16.msra.mxu0 0
      %582 = vmatprep.subr.bf16.mxu0 0
      %583 = vmatpush1.bf16.msra.mxu0 0
      %584 = vmatprep.subr.bf16.mxu0 0
      %585 = vmatpush1.bf16.msra.mxu0 0
      %586 = vmatprep.subr.bf16.mxu0 0
      %587 = vmatpush1.bf16.msra.mxu0 0
      %588 = vmatprep.mubr.bf16.mxu0 0
      %589 = vmatmul.mubr.bf16.gmra.mrb[0].mxu0 %v500
      %v590 = vpop.f32.mrb[0].mxu0
      %v591 = vadd.f32 %v487, %v590
      %v592 = vpop.f32.mrb[0].mxu0
      %v593 = vadd.f32 %v487, %v592
      %v594 = vpop.f32.mrb[0].mxu0
      %v595 = vadd.f32 %v492, %v594
      %v596 = vpop.f32.mrb[0].mxu0
      %v597 = vadd.f32 %v492, %v596
      %598 = vmatprep.mubr.bf16.mxu0 0
      %599 = vmatmul.mubr.bf16.gmra.mrb[0].mxu0 %v503
      %v600 = vpop.f32.mrb[0].mxu0
      %v601 = vadd.f32 %v497, %v600
      %v602 = vpop.f32.mrb[0].mxu0
      %v603 = vadd.f32 %v497, %v602
      %v604 = vpop.f32.mrb[0].mxu0
      %v605 = vpop.f32.mrb[0].mxu0
      %606 = vdwg.mxu0
      %v607 = vmax.f32 %v550, 0.0
      %v608 = vmax.f32 %v552, 0.0
      %v609 = vmax.f32 %v601, 0.0
      %v610 = vmax.f32 %v603, 0.0
      %v611 = vsub.f32 0.0, %v607
      %v612 = vsub.f32 0.0, %v608
      %v613 = vsub.f32 0.0, %v609
      %v614 = vsub.f32 0.0, %v610
      %v615 = vmul.f32 %v611, 0.1875
      %v616 = vmul.f32 %v612, 0.1875
      %v617 = vmul.f32 %v613, 0.1875
      %v618 = vmul.f32 %v614, 0.1875
      %v619 = vmul.f32 %v615, 1.442695
      %v620 = vpow.pop %v619
      %v621 = vmul.f32 %v616, 1.442695
      %v622 = vpow.pop %v621
      %v623 = vmul.f32 %v617, 1.442695
      %v624 = vpow.pop %v623
      %v625 = vmul.f32 %v618, 1.442695
      %v626 = vpow.pop %v625
      %v627 = vsub.f32 1.0, %v620
      %v628 = vsub.f32 1.0, %v622
      %v629 = vsub.f32 1.0, %v624
      %v630 = vsub.f32 1.0, %v626
      %v631 = vlaneseq
      %v632 = vshrl.u32 %v631, 7
      %v633 = vsub.s32 0, %v632
      %v634 = vrot.slane %v627, %v633
      %v635 = vlaneseq
      %v636 = vshrl.u32 %v635, 7
      %v637 = vsub.s32 0, %v636
      %v638 = vrot.slane %v628, %v637
      %v639 = vmul.f32 %v634, %v540
      %v640 = vmul.f32 %v638, %v542
      %v641 = vmul.f32 %v634, %v544
      %v642 = vmul.f32 %v638, %v546
      %v643 = vadd.f32 %v639, 0.0
      %v644 = vadd.f32 %v640, 0.0
      %v645 = vadd.f32 %v641, 0.0
      %v646 = vadd.f32 %v642, 0.0
      %v647 = vsub.f32 1.0, %v627
      %v648 = vsub.f32 1.0, %v628
      %v649 = vmul.f32 %v647, %v629
      %v650 = vmul.f32 %v648, %v630
      %v651 = vlaneseq
      %v652 = vshrl.u32 %v651, 7
      %v653 = vsub.s32 0, %v652
      %v654 = vrot.slane %v649, %v653
      %v655 = vlaneseq
      %v656 = vshrl.u32 %v655, 7
      %v657 = vsub.s32 0, %v656
      %v658 = vrot.slane %v650, %v657
      %v659 = vmul.f32 %v654, %v591
      %v660 = vmul.f32 %v658, %v593
      %v661 = vmul.f32 %v654, %v595
      %v662 = vmul.f32 %v658, %v597
      %v663 = vadd.f32 %v643, %v659
      %v664 = vadd.f32 %v644, %v660
      %v665 = vadd.f32 %v645, %v661
      %v666 = vadd.f32 %v646, %v662
      %v667 = vsub.f32 1.0, %v629
      %v668 = vsub.f32 1.0, %v630
      %v669 = vmul.f32 %v647, %v667
      %v670 = vmul.f32 %v648, %v668
      %v671 = vld [vmem:[%s0 + $0x20] sm:$0xff]
      %v672 = vld [vmem:[%s0 + $0x28] sm:$0xff]
      %v673 = vld [vmem:[%s0 + $0x30] sm:$0xff]
      %v674 = vld [vmem:[%s0 + $0x38] sm:$0xff]
      %v675 = vld [vmem:[%s0 + $0xa0] sm:$0xff]
      %v676 = vld [vmem:[%s0 + $0xa8] sm:$0xff]
      %v677 = vld [vmem:[%s0 + $0xb0] sm:$0xff]
      %v678 = vld [vmem:[%s0 + $0xb8] sm:$0xff]
      %v679 = vld [vmem:[%s0 + $0x120] sm:$0xff]
      %v680 = vld [vmem:[%s0 + $0x128] sm:$0xff]
      %v681 = vld [vmem:[%s0 + $0x130] sm:$0xff]
      %v682 = vld [vmem:[%s0 + $0x138] sm:$0xff]
      %v683 = vld [vmem:[%s0 + $0x1a0] sm:$0xff]
      %v684 = vld [vmem:[%s0 + $0x1a8] sm:$0xff]
      %v685 = vld [vmem:[%s0 + $0x1b0] sm:$0xff]
      %v686 = vld [vmem:[%s0 + $0x1b8] sm:$0xff]
      %v687 = vadd.f32 %v671, %v270
      %v688 = vadd.f32 %v672, %v270
      %v689 = vadd.f32 %v673, %v270
      %v690 = vadd.f32 %v674, %v270
      %v691 = vadd.f32 %v675, %v275
      %v692 = vadd.f32 %v676, %v275
      %v693 = vadd.f32 %v677, %v275
      %v694 = vadd.f32 %v678, %v275
      %v695 = vadd.f32 %v679, %v280
      %v696 = vadd.f32 %v680, %v280
      %v697 = vadd.f32 %v681, %v280
      %v698 = vadd.f32 %v682, %v280
      %v699 = vadd.f32 %v683, %v285
      %v700 = vadd.f32 %v684, %v285
      %v701 = vadd.f32 %v685, %v285
      %v702 = vadd.f32 %v686, %v285
      %v703 = vmax.f32 %v687, 0.0
      %v704 = vmax.f32 %v688, 0.0
      %v705 = vmax.f32 %v689, 0.0
      %v706 = vmax.f32 %v690, 0.0
      %v707 = vmax.f32 %v691, 0.0
      %v708 = vmax.f32 %v692, 0.0
      %v709 = vmax.f32 %v693, 0.0
      %v710 = vmax.f32 %v694, 0.0
      %v711 = vmax.f32 %v695, 0.0
      %v712 = vmax.f32 %v696, 0.0
      %v713 = vmax.f32 %v697, 0.0
      %v714 = vmax.f32 %v698, 0.0
      %v715 = vmax.f32 %v699, 0.0
      %v716 = vmax.f32 %v700, 0.0
      %v717 = vmax.f32 %v701, 0.0
      %v718 = vmax.f32 %v702, 0.0
      %v719 = vpack.c.bf16 %v707, %v703
      %v720 = vpack.c.bf16 %v708, %v704
      %v721 = vpack.c.bf16 %v709, %v705
      %v722 = vpack.c.bf16 %v710, %v706
      %v723 = vpack.c.bf16 %v715, %v711
      %v724 = vpack.c.bf16 %v716, %v712
      %v725 = vpack.c.bf16 %v717, %v713
      %v726 = vpack.c.bf16 %v718, %v714
      %727 = vmatprep.subr.bf16.mxu0 %v720
      %728 = vmatpush1.bf16.msra.mxu0 %v719
      %729 = vmatprep.subr.bf16.mxu0 %v724
      %730 = vmatpush1.bf16.msra.mxu0 %v723
      %731 = vmatprep.subr.bf16.mxu0 0
      %732 = vmatpush1.bf16.msra.mxu0 0
      %733 = vmatprep.subr.bf16.mxu0 0
      %734 = vmatpush1.bf16.msra.mxu0 0
      %735 = vmatprep.subr.bf16.mxu0 0
      %736 = vmatpush1.bf16.msra.mxu0 0
      %737 = vmatprep.subr.bf16.mxu0 0
      %738 = vmatpush1.bf16.msra.mxu0 0
      %739 = vmatprep.subr.bf16.mxu0 0
      %740 = vmatpush1.bf16.msra.mxu0 0
      %741 = vmatprep.subr.bf16.mxu0 0
      %742 = vmatpush1.bf16.msra.mxu0 0
      %743 = vmatprep.subr.bf16.mxu0 0
      %744 = vmatpush1.bf16.msra.mxu0 0
      %745 = vmatprep.subr.bf16.mxu0 0
      %746 = vmatpush1.bf16.msra.mxu0 0
      %747 = vmatprep.subr.bf16.mxu0 0
      %748 = vmatpush1.bf16.msra.mxu0 0
      %749 = vmatprep.subr.bf16.mxu0 0
      %750 = vmatpush1.bf16.msra.mxu0 0
      %751 = vmatprep.subr.bf16.mxu0 0
      %752 = vmatpush1.bf16.msra.mxu0 0
      %753 = vmatprep.subr.bf16.mxu0 0
      %754 = vmatpush1.bf16.msra.mxu0 0
      %755 = vmatprep.subr.bf16.mxu0 0
      %756 = vmatpush1.bf16.msra.mxu0 0
      %757 = vmatprep.subr.bf16.mxu0 0
      %758 = vmatpush1.bf16.msra.mxu0 0
      %759 = vmatprep.mubr.bf16.mxu0 0
      %760 = vmatmul.mubr.bf16.gmra.mrb[0].mxu0 %v349
      %v761 = vpop.f32.mrb[0].mxu0
      %v762 = vadd.f32 %v330, %v761
      %v763 = vpop.f32.mrb[0].mxu0
      %v764 = vadd.f32 %v330, %v763
      %v765 = vpop.f32.mrb[0].mxu0
      %v766 = vadd.f32 %v335, %v765
      %v767 = vpop.f32.mrb[0].mxu0
      %v768 = vadd.f32 %v335, %v767
      %769 = vmatprep.mubr.bf16.mxu0 0
      %770 = vmatmul.mubr.bf16.gmra.mrb[0].mxu0 %v352
      %v771 = vpop.f32.mrb[0].mxu0
      %v772 = vadd.f32 %v340, %v771
      %v773 = vpop.f32.mrb[0].mxu0
      %v774 = vadd.f32 %v340, %v773
      %v775 = vpop.f32.mrb[0].mxu0
      %v776 = vadd.f32 %v345, %v775
      %v777 = vpop.f32.mrb[0].mxu0
      %v778 = vadd.f32 %v345, %v777
      %779 = vdwg.mxu0
      %780 = vmatprep.subr.bf16.mxu0 %v722
      %781 = vmatpush1.bf16.msra.mxu0 %v721
      %782 = vmatprep.subr.bf16.mxu0 %v726
      %783 = vmatpush1.bf16.msra.mxu0 %v725
      %784 = vmatprep.subr.bf16.mxu0 0
      %785 = vmatpush1.bf16.msra.mxu0 0
      %786 = vmatprep.subr.bf16.mxu0 0
      %787 = vmatpush1.bf16.msra.mxu0 0
      %788 = vmatprep.subr.bf16.mxu0 0
      %789 = vmatpush1.bf16.msra.mxu0 0
      %790 = vmatprep.subr.bf16.mxu0 0
      %791 = vmatpush1.bf16.msra.mxu0 0
      %792 = vmatprep.subr.bf16.mxu0 0
      %793 = vmatpush1.bf16.msra.mxu0 0
      %794 = vmatprep.subr.bf16.mxu0 0
      %795 = vmatpush1.bf16.msra.mxu0 0
      %796 = vmatprep.subr.bf16.mxu0 0
      %797 = vmatpush1.bf16.msra.mxu0 0
      %798 = vmatprep.subr.bf16.mxu0 0
      %799 = vmatpush1.bf16.msra.mxu0 0
      %800 = vmatprep.subr.bf16.mxu0 0
      %801 = vmatpush1.bf16.msra.mxu0 0
      %802 = vmatprep.subr.bf16.mxu0 0
      %803 = vmatpush1.bf16.msra.mxu0 0
      %804 = vmatprep.subr.bf16.mxu0 0
      %805 = vmatpush1.bf16.msra.mxu0 0
      %806 = vmatprep.subr.bf16.mxu0 0
      %807 = vmatpush1.bf16.msra.mxu0 0
      %808 = vmatprep.subr.bf16.mxu0 0
      %809 = vmatpush1.bf16.msra.mxu0 0
      %810 = vmatprep.subr.bf16.mxu0 0
      %811 = vmatpush1.bf16.msra.mxu0 0
      %812 = vmatprep.mubr.bf16.mxu0 0
      %813 = vmatmul.mubr.bf16.gmra.mrb[0].mxu0 %v349
      %v814 = vpop.f32.mrb[0].mxu0
      %v815 = vadd.f32 %v330, %v814
      %v816 = vpop.f32.mrb[0].mxu0
      %v817 = vadd.f32 %v330, %v816
      %v818 = vpop.f32.mrb[0].mxu0
      %v819 = vadd.f32 %v335, %v818
      %v820 = vpop.f32.mrb[0].mxu0
      %v821 = vadd.f32 %v335, %v820
      %822 = vmatprep.mubr.bf16.mxu0 0
      %823 = vmatmul.mubr.bf16.gmra.mrb[0].mxu0 %v352
      %v824 = vpop.f32.mrb[0].mxu0
      %v825 = vadd.f32 %v340, %v824
      %v826 = vpop.f32.mrb[0].mxu0
      %v827 = vadd.f32 %v340, %v826
      %v828 = vpop.f32.mrb[0].mxu0
      %v829 = vadd.f32 %v345, %v828
      %v830 = vpop.f32.mrb[0].mxu0
      %v831 = vadd.f32 %v345, %v830
      %832 = vdwg.mxu0
      %v833 = vmax.f32 %v762, 0.0
      %v834 = vmax.f32 %v764, 0.0
      %v835 = vmax.f32 %v815, 0.0
      %v836 = vmax.f32 %v817, 0.0
      %v837 = vmax.f32 %v766, 0.0
      %v838 = vmax.f32 %v768, 0.0
      %v839 = vmax.f32 %v819, 0.0
      %v840 = vmax.f32 %v821, 0.0
      %v841 = vmax.f32 %v772, 0.0
      %v842 = vmax.f32 %v774, 0.0
      %v843 = vmax.f32 %v825, 0.0
      %v844 = vmax.f32 %v827, 0.0
      %v845 = vmax.f32 %v776, 0.0
      %v846 = vmax.f32 %v778, 0.0
      %v847 = vmax.f32 %v829, 0.0
      %v848 = vmax.f32 %v831, 0.0
      %v849 = vpack.c.bf16 %v837, %v833
      %v850 = vpack.c.bf16 %v838, %v834
      %v851 = vpack.c.bf16 %v839, %v835
      %v852 = vpack.c.bf16 %v840, %v836
      %v853 = vpack.c.bf16 %v845, %v841
      %v854 = vpack.c.bf16 %v846, %v842
      %v855 = vpack.c.bf16 %v847, %v843
      %v856 = vpack.c.bf16 %v848, %v844
      %857 = vmatprep.subr.bf16.mxu0 %v850
      %858 = vmatpush1.bf16.msra.mxu0 %v849
      %859 = vmatprep.subr.bf16.mxu0 %v854
      %860 = vmatpush1.bf16.msra.mxu0 %v853
      %861 = vmatprep.subr.bf16.mxu0 0
      %862 = vmatpush1.bf16.msra.mxu0 0
      %863 = vmatprep.subr.bf16.mxu0 0
      %864 = vmatpush1.bf16.msra.mxu0 0
      %865 = vmatprep.subr.bf16.mxu0 0
      %866 = vmatpush1.bf16.msra.mxu0 0
      %867 = vmatprep.subr.bf16.mxu0 0
      %868 = vmatpush1.bf16.msra.mxu0 0
      %869 = vmatprep.subr.bf16.mxu0 0
      %870 = vmatpush1.bf16.msra.mxu0 0
      %871 = vmatprep.subr.bf16.mxu0 0
      %872 = vmatpush1.bf16.msra.mxu0 0
      %873 = vmatprep.subr.bf16.mxu0 0
      %874 = vmatpush1.bf16.msra.mxu0 0
      %875 = vmatprep.subr.bf16.mxu0 0
      %876 = vmatpush1.bf16.msra.mxu0 0
      %877 = vmatprep.subr.bf16.mxu0 0
      %878 = vmatpush1.bf16.msra.mxu0 0
      %879 = vmatprep.subr.bf16.mxu0 0
      %880 = vmatpush1.bf16.msra.mxu0 0
      %881 = vmatprep.subr.bf16.mxu0 0
      %882 = vmatpush1.bf16.msra.mxu0 0
      %883 = vmatprep.subr.bf16.mxu0 0
      %884 = vmatpush1.bf16.msra.mxu0 0
      %885 = vmatprep.subr.bf16.mxu0 0
      %886 = vmatpush1.bf16.msra.mxu0 0
      %887 = vmatprep.subr.bf16.mxu0 0
      %888 = vmatpush1.bf16.msra.mxu0 0
      %889 = vmatprep.mubr.bf16.mxu0 0
      %890 = vmatmul.mubr.bf16.gmra.mrb[0].mxu0 %v500
      %v891 = vpop.f32.mrb[0].mxu0
      %v892 = vadd.f32 %v487, %v891
      %v893 = vpop.f32.mrb[0].mxu0
      %v894 = vadd.f32 %v487, %v893
      %v895 = vpop.f32.mrb[0].mxu0
      %v896 = vadd.f32 %v492, %v895
      %v897 = vpop.f32.mrb[0].mxu0
      %v898 = vadd.f32 %v492, %v897
      %899 = vmatprep.mubr.bf16.mxu0 0
      %900 = vmatmul.mubr.bf16.gmra.mrb[0].mxu0 %v503
      %v901 = vpop.f32.mrb[0].mxu0
      %v902 = vadd.f32 %v497, %v901
      %v903 = vpop.f32.mrb[0].mxu0
      %v904 = vadd.f32 %v497, %v903
      %v905 = vpop.f32.mrb[0].mxu0
      %v906 = vpop.f32.mrb[0].mxu0
      %907 = vdwg.mxu0
      %908 = vmatprep.subr.bf16.mxu0 %v852
      %909 = vmatpush1.bf16.msra.mxu0 %v851
      %910 = vmatprep.subr.bf16.mxu0 %v856
      %911 = vmatpush1.bf16.msra.mxu0 %v855
      %912 = vmatprep.subr.bf16.mxu0 0
      %913 = vmatpush1.bf16.msra.mxu0 0
      %914 = vmatprep.subr.bf16.mxu0 0
      %915 = vmatpush1.bf16.msra.mxu0 0
      %916 = vmatprep.subr.bf16.mxu0 0
      %917 = vmatpush1.bf16.msra.mxu0 0
      %918 = vmatprep.subr.bf16.mxu0 0
      %919 = vmatpush1.bf16.msra.mxu0 0
      %920 = vmatprep.subr.bf16.mxu0 0
      %921 = vmatpush1.bf16.msra.mxu0 0
      %922 = vmatprep.subr.bf16.mxu0 0
      %923 = vmatpush1.bf16.msra.mxu0 0
      %924 = vmatprep.subr.bf16.mxu0 0
      %925 = vmatpush1.bf16.msra.mxu0 0
      %926 = vmatprep.subr.bf16.mxu0 0
      %927 = vmatpush1.bf16.msra.mxu0 0
      %928 = vmatprep.subr.bf16.mxu0 0
      %929 = vmatpush1.bf16.msra.mxu0 0
      %930 = vmatprep.subr.bf16.mxu0 0
      %931 = vmatpush1.bf16.msra.mxu0 0
      %932 = vmatprep.subr.bf16.mxu0 0
      %933 = vmatpush1.bf16.msra.mxu0 0
      %934 = vmatprep.subr.bf16.mxu0 0
      %935 = vmatpush1.bf16.msra.mxu0 0
      %936 = vmatprep.subr.bf16.mxu0 0
      %937 = vmatpush1.bf16.msra.mxu0 0
      %938 = vmatprep.subr.bf16.mxu0 0
      %939 = vmatpush1.bf16.msra.mxu0 0
      %940 = vmatprep.mubr.bf16.mxu0 0
      %941 = vmatmul.mubr.bf16.gmra.mrb[0].mxu0 %v500
      %v942 = vpop.f32.mrb[0].mxu0
      %v943 = vadd.f32 %v487, %v942
      %v944 = vpop.f32.mrb[0].mxu0
      %v945 = vadd.f32 %v487, %v944
      %v946 = vpop.f32.mrb[0].mxu0
      %v947 = vadd.f32 %v492, %v946
      %v948 = vpop.f32.mrb[0].mxu0
      %v949 = vadd.f32 %v492, %v948
      %950 = vmatprep.mubr.bf16.mxu0 0
      %951 = vmatmul.mubr.bf16.gmra.mrb[0].mxu0 %v503
      %v952 = vpop.f32.mrb[0].mxu0
      %v953 = vadd.f32 %v497, %v952
      %v954 = vpop.f32.mrb[0].mxu0
      %v955 = vadd.f32 %v497, %v954
      %v956 = vpop.f32.mrb[0].mxu0
      %v957 = vpop.f32.mrb[0].mxu0
      %958 = vdwg.mxu0
      %v959 = vmax.f32 %v902, 0.0
      %v960 = vmax.f32 %v904, 0.0
      %v961 = vmax.f32 %v953, 0.0
      %v962 = vmax.f32 %v955, 0.0
      %v963 = vsub.f32 0.0, %v959
      %v964 = vsub.f32 0.0, %v960
      %v965 = vsub.f32 0.0, %v961
      %v966 = vsub.f32 0.0, %v962
      %v967 = vmul.f32 %v963, 0.1875
      %v968 = vmul.f32 %v964, 0.1875
      %v969 = vmul.f32 %v965, 0.1875
      %v970 = vmul.f32 %v966, 0.1875
      %v971 = vmul.f32 %v967, 1.442695
      %v972 = vpow.pop %v971
      %v973 = vmul.f32 %v968, 1.442695
      %v974 = vpow.pop %v973
      %v975 = vmul.f32 %v969, 1.442695
      %v976 = vpow.pop %v975
      %v977 = vmul.f32 %v970, 1.442695
      %v978 = vpow.pop %v977
      %v979 = vsub.f32 1.0, %v972
      %v980 = vsub.f32 1.0, %v974
      %v981 = vsub.f32 1.0, %v976
      %v982 = vsub.f32 1.0, %v978
      %v983 = vmul.f32 %v669, %v979
      %v984 = vmul.f32 %v670, %v980
      %v985 = vlaneseq
      %v986 = vshrl.u32 %v985, 7
      %v987 = vsub.s32 0, %v986
      %v988 = vrot.slane %v983, %v987
      %v989 = vlaneseq
      %v990 = vshrl.u32 %v989, 7
      %v991 = vsub.s32 0, %v990
      %v992 = vrot.slane %v984, %v991
      %v993 = vmul.f32 %v988, %v892
      %v994 = vmul.f32 %v992, %v894
      %v995 = vmul.f32 %v988, %v896
      %v996 = vmul.f32 %v992, %v898
      %v997 = vadd.f32 %v663, %v993
      %v998 = vadd.f32 %v664, %v994
      %v999 = vadd.f32 %v665, %v995
      %v1000 = vadd.f32 %v666, %v996
      %v1001 = vsub.f32 1.0, %v979
      %v1002 = vsub.f32 1.0, %v980
      %v1003 = vmul.f32 %v669, %v1001
      %v1004 = vmul.f32 %v670, %v1002
      %v1005 = vmul.f32 %v1003, %v981
      %v1006 = vmul.f32 %v1004, %v982
      %v1007 = vlaneseq
      %v1008 = vshrl.u32 %v1007, 7
      %v1009 = vsub.s32 0, %v1008
      %v1010 = vrot.slane %v1005, %v1009
      %v1011 = vlaneseq
      %v1012 = vshrl.u32 %v1011, 7
      %v1013 = vsub.s32 0, %v1012
      %v1014 = vrot.slane %v1006, %v1013
      %v1015 = vmul.f32 %v1010, %v943
      %v1016 = vmul.f32 %v1014, %v945
      %v1017 = vmul.f32 %v1010, %v947
      %v1018 = vmul.f32 %v1014, %v949
      %v1019 = vadd.f32 %v997, %v1015
      %v1020 = vadd.f32 %v998, %v1016
      %v1021 = vadd.f32 %v999, %v1017
      %v1022 = vadd.f32 %v1000, %v1018
      %v1023 = vsub.f32 1.0, %v981
      %v1024 = vsub.f32 1.0, %v982
      %v1025 = vmul.f32 %v1003, %v1023
      %v1026 = vmul.f32 %v1004, %v1024
      %v1027 = vld [vmem:[%s0 + $0x40] sm:$0xff]
      %v1028 = vld [vmem:[%s0 + $0x48] sm:$0xff]
      %v1029 = vld [vmem:[%s0 + $0x50] sm:$0xff]
      %v1030 = vld [vmem:[%s0 + $0x58] sm:$0xff]
      %v1031 = vld [vmem:[%s0 + $0xc0] sm:$0xff]
      %v1032 = vld [vmem:[%s0 + $0xc8] sm:$0xff]
      %v1033 = vld [vmem:[%s0 + $0xd0] sm:$0xff]
      %v1034 = vld [vmem:[%s0 + $0xd8] sm:$0xff]
      %v1035 = vld [vmem:[%s0 + $0x140] sm:$0xff]
      %v1036 = vld [vmem:[%s0 + $0x148] sm:$0xff]
      %v1037 = vld [vmem:[%s0 + $0x150] sm:$0xff]
      %v1038 = vld [vmem:[%s0 + $0x158] sm:$0xff]
      %v1039 = vld [vmem:[%s0 + $0x1c0] sm:$0xff]
      %v1040 = vld [vmem:[%s0 + $0x1c8] sm:$0xff]
      %v1041 = vld [vmem:[%s0 + $0x1d0] sm:$0xff]
      %v1042 = vld [vmem:[%s0 + $0x1d8] sm:$0xff]
      %v1043 = vadd.f32 %v1027, %v270
      %v1044 = vadd.f32 %v1028, %v270
      %v1045 = vadd.f32 %v1029, %v270
      %v1046 = vadd.f32 %v1030, %v270
      %v1047 = vadd.f32 %v1031, %v275
      %v1048 = vadd.f32 %v1032, %v275
      %v1049 = vadd.f32 %v1033, %v275
      %v1050 = vadd.f32 %v1034, %v275
      %v1051 = vadd.f32 %v1035, %v280
      %v1052 = vadd.f32 %v1036, %v280
      %v1053 = vadd.f32 %v1037, %v280
      %v1054 = vadd.f32 %v1038, %v280
      %v1055 = vadd.f32 %v1039, %v285
      %v1056 = vadd.f32 %v1040, %v285
      %v1057 = vadd.f32 %v1041, %v285
      %v1058 = vadd.f32 %v1042, %v285
      %v1059 = vmax.f32 %v1043, 0.0
      %v1060 = vmax.f32 %v1044, 0.0
      %v1061 = vmax.f32 %v1045, 0.0
      %v1062 = vmax.f32 %v1046, 0.0
      %v1063 = vmax.f32 %v1047, 0.0
      %v1064 = vmax.f32 %v1048, 0.0
      %v1065 = vmax.f32 %v1049, 0.0
      %v1066 = vmax.f32 %v1050, 0.0
      %v1067 = vmax.f32 %v1051, 0.0
      %v1068 = vmax.f32 %v1052, 0.0
      %v1069 = vmax.f32 %v1053, 0.0
      %v1070 = vmax.f32 %v1054, 0.0
      %v1071 = vmax.f32 %v1055, 0.0
      %v1072 = vmax.f32 %v1056, 0.0
      %v1073 = vmax.f32 %v1057, 0.0
      %v1074 = vmax.f32 %v1058, 0.0
      %v1075 = vpack.c.bf16 %v1063, %v1059
      %v1076 = vpack.c.bf16 %v1064, %v1060
      %v1077 = vpack.c.bf16 %v1065, %v1061
      %v1078 = vpack.c.bf16 %v1066, %v1062
      %v1079 = vpack.c.bf16 %v1071, %v1067
      %v1080 = vpack.c.bf16 %v1072, %v1068
      %v1081 = vpack.c.bf16 %v1073, %v1069
      %v1082 = vpack.c.bf16 %v1074, %v1070
      %1083 = vmatprep.subr.bf16.mxu0 %v1076
      %1084 = vmatpush1.bf16.msra.mxu0 %v1075
      %1085 = vmatprep.subr.bf16.mxu0 %v1080
      %1086 = vmatpush1.bf16.msra.mxu0 %v1079
      %1087 = vmatprep.subr.bf16.mxu0 0
      %1088 = vmatpush1.bf16.msra.mxu0 0
      %1089 = vmatprep.subr.bf16.mxu0 0
      %1090 = vmatpush1.bf16.msra.mxu0 0
      %1091 = vmatprep.subr.bf16.mxu0 0
      %1092 = vmatpush1.bf16.msra.mxu0 0
      %1093 = vmatprep.subr.bf16.mxu0 0
      %1094 = vmatpush1.bf16.msra.mxu0 0
      %1095 = vmatprep.subr.bf16.mxu0 0
      %1096 = vmatpush1.bf16.msra.mxu0 0
      %1097 = vmatprep.subr.bf16.mxu0 0
      %1098 = vmatpush1.bf16.msra.mxu0 0
      %1099 = vmatprep.subr.bf16.mxu0 0
      %1100 = vmatpush1.bf16.msra.mxu0 0
      %1101 = vmatprep.subr.bf16.mxu0 0
      %1102 = vmatpush1.bf16.msra.mxu0 0
      %1103 = vmatprep.subr.bf16.mxu0 0
      %1104 = vmatpush1.bf16.msra.mxu0 0
      %1105 = vmatprep.subr.bf16.mxu0 0
      %1106 = vmatpush1.bf16.msra.mxu0 0
      %1107 = vmatprep.subr.bf16.mxu0 0
      %1108 = vmatpush1.bf16.msra.mxu0 0
      %1109 = vmatprep.subr.bf16.mxu0 0
      %1110 = vmatpush1.bf16.msra.mxu0 0
      %1111 = vmatprep.subr.bf16.mxu0 0
      %1112 = vmatpush1.bf16.msra.mxu0 0
      %1113 = vmatprep.subr.bf16.mxu0 0
      %1114 = vmatpush1.bf16.msra.mxu0 0
      %1115 = vmatprep.mubr.bf16.mxu0 0
      %1116 = vmatmul.mubr.bf16.gmra.mrb[0].mxu0 %v349
      %v1117 = vpop.f32.mrb[0].mxu0
      %v1118 = vadd.f32 %v330, %v1117
      %v1119 = vpop.f32.mrb[0].mxu0
      %v1120 = vadd.f32 %v330, %v1119
      %v1121 = vpop.f32.mrb[0].mxu0
      %v1122 = vadd.f32 %v335, %v1121
      %v1123 = vpop.f32.mrb[0].mxu0
      %v1124 = vadd.f32 %v335, %v1123
      %1125 = vmatprep.mubr.bf16.mxu0 0
      %1126 = vmatmul.mubr.bf16.gmra.mrb[0].mxu0 %v352
      %v1127 = vpop.f32.mrb[0].mxu0
      %v1128 = vadd.f32 %v340, %v1127
      %v1129 = vpop.f32.mrb[0].mxu0
      %v1130 = vadd.f32 %v340, %v1129
      %v1131 = vpop.f32.mrb[0].mxu0
      %v1132 = vadd.f32 %v345, %v1131
      %v1133 = vpop.f32.mrb[0].mxu0
      %v1134 = vadd.f32 %v345, %v1133
      %1135 = vdwg.mxu0
      %1136 = vmatprep.subr.bf16.mxu0 %v1078
      %1137 = vmatpush1.bf16.msra.mxu0 %v1077
      %1138 = vmatprep.subr.bf16.mxu0 %v1082
      %1139 = vmatpush1.bf16.msra.mxu0 %v1081
      %1140 = vmatprep.subr.bf16.mxu0 0
      %1141 = vmatpush1.bf16.msra.mxu0 0
      %1142 = vmatprep.subr.bf16.mxu0 0
      %1143 = vmatpush1.bf16.msra.mxu0 0
      %1144 = vmatprep.subr.bf16.mxu0 0
      %1145 = vmatpush1.bf16.msra.mxu0 0
      %1146 = vmatprep.subr.bf16.mxu0 0
      %1147 = vmatpush1.bf16.msra.mxu0 0
      %1148 = vmatprep.subr.bf16.mxu0 0
      %1149 = vmatpush1.bf16.msra.mxu0 0
      %1150 = vmatprep.subr.bf16.mxu0 0
      %1151 = vmatpush1.bf16.msra.mxu0 0
      %1152 = vmatprep.subr.bf16.mxu0 0
      %1153 = vmatpush1.bf16.msra.mxu0 0
      %1154 = vmatprep.subr.bf16.mxu0 0
      %1155 = vmatpush1.bf16.msra.mxu0 0
      %1156 = vmatprep.subr.bf16.mxu0 0
      %1157 = vmatpush1.bf16.msra.mxu0 0
      %1158 = vmatprep.subr.bf16.mxu0 0
      %1159 = vmatpush1.bf16.msra.mxu0 0
      %1160 = vmatprep.subr.bf16.mxu0 0
      %1161 = vmatpush1.bf16.msra.mxu0 0
      %1162 = vmatprep.subr.bf16.mxu0 0
      %1163 = vmatpush1.bf16.msra.mxu0 0
      %1164 = vmatprep.subr.bf16.mxu0 0
      %1165 = vmatpush1.bf16.msra.mxu0 0
      %1166 = vmatprep.subr.bf16.mxu0 0
      %1167 = vmatpush1.bf16.msra.mxu0 0
      %1168 = vmatprep.mubr.bf16.mxu0 0
      %1169 = vmatmul.mubr.bf16.gmra.mrb[0].mxu0 %v349
      %v1170 = vpop.f32.mrb[0].mxu0
      %v1171 = vadd.f32 %v330, %v1170
      %v1172 = vpop.f32.mrb[0].mxu0
      %v1173 = vadd.f32 %v330, %v1172
      %v1174 = vpop.f32.mrb[0].mxu0
      %v1175 = vadd.f32 %v335, %v1174
      %v1176 = vpop.f32.mrb[0].mxu0
      %v1177 = vadd.f32 %v335, %v1176
      %1178 = vmatprep.mubr.bf16.mxu0 0
      %1179 = vmatmul.mubr.bf16.gmra.mrb[0].mxu0 %v352
      %v1180 = vpop.f32.mrb[0].mxu0
      %v1181 = vadd.f32 %v340, %v1180
      %v1182 = vpop.f32.mrb[0].mxu0
      %v1183 = vadd.f32 %v340, %v1182
      %v1184 = vpop.f32.mrb[0].mxu0
      %v1185 = vadd.f32 %v345, %v1184
      %v1186 = vpop.f32.mrb[0].mxu0
      %v1187 = vadd.f32 %v345, %v1186
      %1188 = vdwg.mxu0
      %v1189 = vmax.f32 %v1118, 0.0
      %v1190 = vmax.f32 %v1120, 0.0
      %v1191 = vmax.f32 %v1171, 0.0
      %v1192 = vmax.f32 %v1173, 0.0
      %v1193 = vmax.f32 %v1122, 0.0
      %v1194 = vmax.f32 %v1124, 0.0
      %v1195 = vmax.f32 %v1175, 0.0
      %v1196 = vmax.f32 %v1177, 0.0
      %v1197 = vmax.f32 %v1128, 0.0
      %v1198 = vmax.f32 %v1130, 0.0
      %v1199 = vmax.f32 %v1181, 0.0
      %v1200 = vmax.f32 %v1183, 0.0
      %v1201 = vmax.f32 %v1132, 0.0
      %v1202 = vmax.f32 %v1134, 0.0
      %v1203 = vmax.f32 %v1185, 0.0
      %v1204 = vmax.f32 %v1187, 0.0
      %v1205 = vpack.c.bf16 %v1193, %v1189
      %v1206 = vpack.c.bf16 %v1194, %v1190
      %v1207 = vpack.c.bf16 %v1195, %v1191
      %v1208 = vpack.c.bf16 %v1196, %v1192
      %v1209 = vpack.c.bf16 %v1201, %v1197
      %v1210 = vpack.c.bf16 %v1202, %v1198
      %v1211 = vpack.c.bf16 %v1203, %v1199
      %v1212 = vpack.c.bf16 %v1204, %v1200
      %1213 = vmatprep.subr.bf16.mxu0 %v1206
      %1214 = vmatpush1.bf16.msra.mxu0 %v1205
      %1215 = vmatprep.subr.bf16.mxu0 %v1210
      %1216 = vmatpush1.bf16.msra.mxu0 %v1209
      %1217 = vmatprep.subr.bf16.mxu0 0
      %1218 = vmatpush1.bf16.msra.mxu0 0
      %1219 = vmatprep.subr.bf16.mxu0 0
      %1220 = vmatpush1.bf16.msra.mxu0 0
      %1221 = vmatprep.subr.bf16.mxu0 0
      %1222 = vmatpush1.bf16.msra.mxu0 0
      %1223 = vmatprep.subr.bf16.mxu0 0
      %1224 = vmatpush1.bf16.msra.mxu0 0
      %1225 = vmatprep.subr.bf16.mxu0 0
      %1226 = vmatpush1.bf16.msra.mxu0 0
      %1227 = vmatprep.subr.bf16.mxu0 0
      %1228 = vmatpush1.bf16.msra.mxu0 0
      %1229 = vmatprep.subr.bf16.mxu0 0
      %1230 = vmatpush1.bf16.msra.mxu0 0
      %1231 = vmatprep.subr.bf16.mxu0 0
      %1232 = vmatpush1.bf16.msra.mxu0 0
      %1233 = vmatprep.subr.bf16.mxu0 0
      %1234 = vmatpush1.bf16.msra.mxu0 0
      %1235 = vmatprep.subr.bf16.mxu0 0
      %1236 = vmatpush1.bf16.msra.mxu0 0
      %1237 = vmatprep.subr.bf16.mxu0 0
      %1238 = vmatpush1.bf16.msra.mxu0 0
      %1239 = vmatprep.subr.bf16.mxu0 0
      %1240 = vmatpush1.bf16.msra.mxu0 0
      %1241 = vmatprep.subr.bf16.mxu0 0
      %1242 = vmatpush1.bf16.msra.mxu0 0
      %1243 = vmatprep.subr.bf16.mxu0 0
      %1244 = vmatpush1.bf16.msra.mxu0 0
      %1245 = vmatprep.mubr.bf16.mxu0 0
      %1246 = vmatmul.mubr.bf16.gmra.mrb[0].mxu0 %v500
      %v1247 = vpop.f32.mrb[0].mxu0
      %v1248 = vadd.f32 %v487, %v1247
      %v1249 = vpop.f32.mrb[0].mxu0
      %v1250 = vadd.f32 %v487, %v1249
      %v1251 = vpop.f32.mrb[0].mxu0
      %v1252 = vadd.f32 %v492, %v1251
      %v1253 = vpop.f32.mrb[0].mxu0
      %v1254 = vadd.f32 %v492, %v1253
      %1255 = vmatprep.mubr.bf16.mxu0 0
      %1256 = vmatmul.mubr.bf16.gmra.mrb[0].mxu0 %v503
      %v1257 = vpop.f32.mrb[0].mxu0
      %v1258 = vadd.f32 %v497, %v1257
      %v1259 = vpop.f32.mrb[0].mxu0
      %v1260 = vadd.f32 %v497, %v1259
      %v1261 = vpop.f32.mrb[0].mxu0
      %v1262 = vpop.f32.mrb[0].mxu0
      %1263 = vdwg.mxu0
      %1264 = vmatprep.subr.bf16.mxu0 %v1208
      %1265 = vmatpush1.bf16.msra.mxu0 %v1207
      %1266 = vmatprep.subr.bf16.mxu0 %v1212
      %1267 = vmatpush1.bf16.msra.mxu0 %v1211
      %1268 = vmatprep.subr.bf16.mxu0 0
      %1269 = vmatpush1.bf16.msra.mxu0 0
      %1270 = vmatprep.subr.bf16.mxu0 0
      %1271 = vmatpush1.bf16.msra.mxu0 0
      %1272 = vmatprep.subr.bf16.mxu0 0
      %1273 = vmatpush1.bf16.msra.mxu0 0
      %1274 = vmatprep.subr.bf16.mxu0 0
      %1275 = vmatpush1.bf16.msra.mxu0 0
      %1276 = vmatprep.subr.bf16.mxu0 0
      %1277 = vmatpush1.bf16.msra.mxu0 0
      %1278 = vmatprep.subr.bf16.mxu0 0
      %1279 = vmatpush1.bf16.msra.mxu0 0
      %1280 = vmatprep.subr.bf16.mxu0 0
      %1281 = vmatpush1.bf16.msra.mxu0 0
      %1282 = vmatprep.subr.bf16.mxu0 0
      %1283 = vmatpush1.bf16.msra.mxu0 0
      %1284 = vmatprep.subr.bf16.mxu0 0
      %1285 = vmatpush1.bf16.msra.mxu0 0
      %1286 = vmatprep.subr.bf16.mxu0 0
      %1287 = vmatpush1.bf16.msra.mxu0 0
      %1288 = vmatprep.subr.bf16.mxu0 0
      %1289 = vmatpush1.bf16.msra.mxu0 0
      %1290 = vmatprep.subr.bf16.mxu0 0
      %1291 = vmatpush1.bf16.msra.mxu0 0
      %1292 = vmatprep.subr.bf16.mxu0 0
      %1293 = vmatpush1.bf16.msra.mxu0 0
      %1294 = vmatprep.subr.bf16.mxu0 0
      %1295 = vmatpush1.bf16.msra.mxu0 0
      %1296 = vmatprep.mubr.bf16.mxu0 0
      %1297 = vmatmul.mubr.bf16.gmra.mrb[0].mxu0 %v500
      %v1298 = vpop.f32.mrb[0].mxu0
      %v1299 = vadd.f32 %v487, %v1298
      %v1300 = vpop.f32.mrb[0].mxu0
      %v1301 = vadd.f32 %v487, %v1300
      %v1302 = vpop.f32.mrb[0].mxu0
      %v1303 = vadd.f32 %v492, %v1302
      %v1304 = vpop.f32.mrb[0].mxu0
      %v1305 = vadd.f32 %v492, %v1304
      %1306 = vmatprep.mubr.bf16.mxu0 0
      %1307 = vmatmul.mubr.bf16.gmra.mrb[0].mxu0 %v503
      %v1308 = vpop.f32.mrb[0].mxu0
      %v1309 = vadd.f32 %v497, %v1308
      %v1310 = vpop.f32.mrb[0].mxu0
      %v1311 = vadd.f32 %v497, %v1310
      %v1312 = vpop.f32.mrb[0].mxu0
      %v1313 = vpop.f32.mrb[0].mxu0
      %1314 = vdwg.mxu0
      %v1315 = vmax.f32 %v1258, 0.0
      %v1316 = vmax.f32 %v1260, 0.0
      %v1317 = vmax.f32 %v1309, 0.0
      %v1318 = vmax.f32 %v1311, 0.0
      %v1319 = vsub.f32 0.0, %v1315
      %v1320 = vsub.f32 0.0, %v1316
      %v1321 = vsub.f32 0.0, %v1317
      %v1322 = vsub.f32 0.0, %v1318
      %v1323 = vmul.f32 %v1319, 0.1875
      %v1324 = vmul.f32 %v1320, 0.1875
      %v1325 = vmul.f32 %v1321, 0.1875
      %v1326 = vmul.f32 %v1322, 0.1875
      %v1327 = vmul.f32 %v1323, 1.442695
      %v1328 = vpow.pop %v1327
      %v1329 = vmul.f32 %v1324, 1.442695
      %v1330 = vpow.pop %v1329
      %v1331 = vmul.f32 %v1325, 1.442695
      %v1332 = vpow.pop %v1331
      %v1333 = vmul.f32 %v1326, 1.442695
      %v1334 = vpow.pop %v1333
      %v1335 = vsub.f32 1.0, %v1328
      %v1336 = vsub.f32 1.0, %v1330
      %v1337 = vsub.f32 1.0, %v1332
      %v1338 = vsub.f32 1.0, %v1334
      %v1339 = vmul.f32 %v1025, %v1335
      %v1340 = vmul.f32 %v1026, %v1336
      %v1341 = vlaneseq
      %v1342 = vshrl.u32 %v1341, 7
      %v1343 = vsub.s32 0, %v1342
      %v1344 = vrot.slane %v1339, %v1343
      %v1345 = vlaneseq
      %v1346 = vshrl.u32 %v1345, 7
      %v1347 = vsub.s32 0, %v1346
      %v1348 = vrot.slane %v1340, %v1347
      %v1349 = vmul.f32 %v1344, %v1248
      %v1350 = vmul.f32 %v1348, %v1250
      %v1351 = vmul.f32 %v1344, %v1252
      %v1352 = vmul.f32 %v1348, %v1254
      %v1353 = vadd.f32 %v1019, %v1349
      %v1354 = vadd.f32 %v1020, %v1350
      %v1355 = vadd.f32 %v1021, %v1351
      %v1356 = vadd.f32 %v1022, %v1352
      %v1357 = vsub.f32 1.0, %v1335
      %v1358 = vsub.f32 1.0, %v1336
      %v1359 = vmul.f32 %v1025, %v1357
      %v1360 = vmul.f32 %v1026, %v1358
      %v1361 = vmul.f32 %v1359, %v1337
      %v1362 = vmul.f32 %v1360, %v1338
      %v1363 = vlaneseq
      %v1364 = vshrl.u32 %v1363, 7
      %v1365 = vsub.s32 0, %v1364
      %v1366 = vrot.slane %v1361, %v1365
      %v1367 = vlaneseq
      %v1368 = vshrl.u32 %v1367, 7
      %v1369 = vsub.s32 0, %v1368
      %v1370 = vrot.slane %v1362, %v1369
      %v1371 = vmul.f32 %v1366, %v1299
      %v1372 = vmul.f32 %v1370, %v1301
      %v1373 = vmul.f32 %v1366, %v1303
      %v1374 = vmul.f32 %v1370, %v1305
      %v1375 = vadd.f32 %v1353, %v1371
      %v1376 = vadd.f32 %v1354, %v1372
      %v1377 = vadd.f32 %v1355, %v1373
      %v1378 = vadd.f32 %v1356, %v1374
      %v1379 = vsub.f32 1.0, %v1337
      %v1380 = vsub.f32 1.0, %v1338
      %v1381 = vmul.f32 %v1359, %v1379
      %v1382 = vmul.f32 %v1360, %v1380
      %v1383 = vld [vmem:[%s0 + $0x60] sm:$0xff]
      %v1384 = vld [vmem:[%s0 + $0x68] sm:$0xff]
      %v1385 = vld [vmem:[%s0 + $0x70] sm:$0xff]
      %v1386 = vld [vmem:[%s0 + $0x78] sm:$0xff]
      %v1387 = vld [vmem:[%s0 + $0xe0] sm:$0xff]
      %v1388 = vld [vmem:[%s0 + $0xe8] sm:$0xff]
      %v1389 = vld [vmem:[%s0 + $0xf0] sm:$0xff]
      %v1390 = vld [vmem:[%s0 + $0xf8] sm:$0xff]
      %v1391 = vld [vmem:[%s0 + $0x160] sm:$0xff]
      %v1392 = vld [vmem:[%s0 + $0x168] sm:$0xff]
      %v1393 = vld [vmem:[%s0 + $0x170] sm:$0xff]
      %v1394 = vld [vmem:[%s0 + $0x178] sm:$0xff]
      %v1395 = vld [vmem:[%s0 + $0x1e0] sm:$0xff]
      %v1396 = vld [vmem:[%s0 + $0x1e8] sm:$0xff]
      %v1397 = vld [vmem:[%s0 + $0x1f0] sm:$0xff]
      %v1398 = vld [vmem:[%s0 + $0x1f8] sm:$0xff]
      %v1399 = vadd.f32 %v1383, %v270
      %v1400 = vadd.f32 %v1384, %v270
      %v1401 = vadd.f32 %v1385, %v270
      %v1402 = vadd.f32 %v1386, %v270
      %v1403 = vadd.f32 %v1387, %v275
      %v1404 = vadd.f32 %v1388, %v275
      %v1405 = vadd.f32 %v1389, %v275
      %v1406 = vadd.f32 %v1390, %v275
      %v1407 = vadd.f32 %v1391, %v280
      %v1408 = vadd.f32 %v1392, %v280
      %v1409 = vadd.f32 %v1393, %v280
      %v1410 = vadd.f32 %v1394, %v280
      %v1411 = vadd.f32 %v1395, %v285
      %v1412 = vadd.f32 %v1396, %v285
      %v1413 = vadd.f32 %v1397, %v285
      %v1414 = vadd.f32 %v1398, %v285
      %v1415 = vmax.f32 %v1399, 0.0
      %v1416 = vmax.f32 %v1400, 0.0
      %v1417 = vmax.f32 %v1401, 0.0
      %v1418 = vmax.f32 %v1402, 0.0
      %v1419 = vmax.f32 %v1403, 0.0
      %v1420 = vmax.f32 %v1404, 0.0
      %v1421 = vmax.f32 %v1405, 0.0
      %v1422 = vmax.f32 %v1406, 0.0
      %v1423 = vmax.f32 %v1407, 0.0
      %v1424 = vmax.f32 %v1408, 0.0
      %v1425 = vmax.f32 %v1409, 0.0
      %v1426 = vmax.f32 %v1410, 0.0
      %v1427 = vmax.f32 %v1411, 0.0
      %v1428 = vmax.f32 %v1412, 0.0
      %v1429 = vmax.f32 %v1413, 0.0
      %v1430 = vmax.f32 %v1414, 0.0
      %v1431 = vpack.c.bf16 %v1419, %v1415
      %v1432 = vpack.c.bf16 %v1420, %v1416
      %v1433 = vpack.c.bf16 %v1421, %v1417
      %v1434 = vpack.c.bf16 %v1422, %v1418
      %v1435 = vpack.c.bf16 %v1427, %v1423
      %v1436 = vpack.c.bf16 %v1428, %v1424
      %v1437 = vpack.c.bf16 %v1429, %v1425
      %v1438 = vpack.c.bf16 %v1430, %v1426
      %1439 = vmatprep.subr.bf16.mxu0 %v1432
      %1440 = vmatpush1.bf16.msra.mxu0 %v1431
      %1441 = vmatprep.subr.bf16.mxu0 %v1436
      %1442 = vmatpush1.bf16.msra.mxu0 %v1435
      %1443 = vmatprep.subr.bf16.mxu0 0
      %1444 = vmatpush1.bf16.msra.mxu0 0
      %1445 = vmatprep.subr.bf16.mxu0 0
      %1446 = vmatpush1.bf16.msra.mxu0 0
      %1447 = vmatprep.subr.bf16.mxu0 0
      %1448 = vmatpush1.bf16.msra.mxu0 0
      %1449 = vmatprep.subr.bf16.mxu0 0
      %1450 = vmatpush1.bf16.msra.mxu0 0
      %1451 = vmatprep.subr.bf16.mxu0 0
      %1452 = vmatpush1.bf16.msra.mxu0 0
      %1453 = vmatprep.subr.bf16.mxu0 0
      %1454 = vmatpush1.bf16.msra.mxu0 0
      %1455 = vmatprep.subr.bf16.mxu0 0
      %1456 = vmatpush1.bf16.msra.mxu0 0
      %1457 = vmatprep.subr.bf16.mxu0 0
      %1458 = vmatpush1.bf16.msra.mxu0 0
      %1459 = vmatprep.subr.bf16.mxu0 0
      %1460 = vmatpush1.bf16.msra.mxu0 0
      %1461 = vmatprep.subr.bf16.mxu0 0
      %1462 = vmatpush1.bf16.msra.mxu0 0
      %1463 = vmatprep.subr.bf16.mxu0 0
      %1464 = vmatpush1.bf16.msra.mxu0 0
      %1465 = vmatprep.subr.bf16.mxu0 0
      %1466 = vmatpush1.bf16.msra.mxu0 0
      %1467 = vmatprep.subr.bf16.mxu0 0
      %1468 = vmatpush1.bf16.msra.mxu0 0
      %1469 = vmatprep.subr.bf16.mxu0 0
      %1470 = vmatpush1.bf16.msra.mxu0 0
      %1471 = vmatprep.mubr.bf16.mxu0 0
      %1472 = vmatmul.mubr.bf16.gmra.mrb[0].mxu0 %v349
      %v1473 = vpop.f32.mrb[0].mxu0
      %v1474 = vadd.f32 %v330, %v1473
      %v1475 = vpop.f32.mrb[0].mxu0
      %v1476 = vadd.f32 %v330, %v1475
      %v1477 = vpop.f32.mrb[0].mxu0
      %v1478 = vadd.f32 %v335, %v1477
      %v1479 = vpop.f32.mrb[0].mxu0
      %v1480 = vadd.f32 %v335, %v1479
      %1481 = vmatprep.mubr.bf16.mxu0 0
      %1482 = vmatmul.mubr.bf16.gmra.mrb[0].mxu0 %v352
      %v1483 = vpop.f32.mrb[0].mxu0
      %v1484 = vadd.f32 %v340, %v1483
      %v1485 = vpop.f32.mrb[0].mxu0
      %v1486 = vadd.f32 %v340, %v1485
      %v1487 = vpop.f32.mrb[0].mxu0
      %v1488 = vadd.f32 %v345, %v1487
      %v1489 = vpop.f32.mrb[0].mxu0
      %v1490 = vadd.f32 %v345, %v1489
      %1491 = vdwg.mxu0
      %1492 = vmatprep.subr.bf16.mxu0 %v1434
      %1493 = vmatpush1.bf16.msra.mxu0 %v1433
      %1494 = vmatprep.subr.bf16.mxu0 %v1438
      %1495 = vmatpush1.bf16.msra.mxu0 %v1437
      %1496 = vmatprep.subr.bf16.mxu0 0
      %1497 = vmatpush1.bf16.msra.mxu0 0
      %1498 = vmatprep.subr.bf16.mxu0 0
      %1499 = vmatpush1.bf16.msra.mxu0 0
      %1500 = vmatprep.subr.bf16.mxu0 0
      %1501 = vmatpush1.bf16.msra.mxu0 0
      %1502 = vmatprep.subr.bf16.mxu0 0
      %1503 = vmatpush1.bf16.msra.mxu0 0
      %1504 = vmatprep.subr.bf16.mxu0 0
      %1505 = vmatpush1.bf16.msra.mxu0 0
      %1506 = vmatprep.subr.bf16.mxu0 0
      %1507 = vmatpush1.bf16.msra.mxu0 0
      %1508 = vmatprep.subr.bf16.mxu0 0
      %1509 = vmatpush1.bf16.msra.mxu0 0
      %1510 = vmatprep.subr.bf16.mxu0 0
      %1511 = vmatpush1.bf16.msra.mxu0 0
      %1512 = vmatprep.subr.bf16.mxu0 0
      %1513 = vmatpush1.bf16.msra.mxu0 0
      %1514 = vmatprep.subr.bf16.mxu0 0
      %1515 = vmatpush1.bf16.msra.mxu0 0
      %1516 = vmatprep.subr.bf16.mxu0 0
      %1517 = vmatpush1.bf16.msra.mxu0 0
      %1518 = vmatprep.subr.bf16.mxu0 0
      %1519 = vmatpush1.bf16.msra.mxu0 0
      %1520 = vmatprep.subr.bf16.mxu0 0
      %1521 = vmatpush1.bf16.msra.mxu0 0
      %1522 = vmatprep.subr.bf16.mxu0 0
      %1523 = vmatpush1.bf16.msra.mxu0 0
      %1524 = vmatprep.mubr.bf16.mxu0 0
      %1525 = vmatmul.mubr.bf16.gmra.mrb[0].mxu0 %v349
      %v1526 = vpop.f32.mrb[0].mxu0
      %v1527 = vadd.f32 %v330, %v1526
      %v1528 = vpop.f32.mrb[0].mxu0
      %v1529 = vadd.f32 %v330, %v1528
      %v1530 = vpop.f32.mrb[0].mxu0
      %v1531 = vadd.f32 %v335, %v1530
      %v1532 = vpop.f32.mrb[0].mxu0
      %v1533 = vadd.f32 %v335, %v1532
      %1534 = vmatprep.mubr.bf16.mxu0 0
      %1535 = vmatmul.mubr.bf16.gmra.mrb[0].mxu0 %v352
      %v1536 = vpop.f32.mrb[0].mxu0
      %v1537 = vadd.f32 %v340, %v1536
      %v1538 = vpop.f32.mrb[0].mxu0
      %v1539 = vadd.f32 %v340, %v1538
      %v1540 = vpop.f32.mrb[0].mxu0
      %v1541 = vadd.f32 %v345, %v1540
      %v1542 = vpop.f32.mrb[0].mxu0
      %v1543 = vadd.f32 %v345, %v1542
      %1544 = vdwg.mxu0
      %v1545 = vmax.f32 %v1474, 0.0
      %v1546 = vmax.f32 %v1476, 0.0
      %v1547 = vmax.f32 %v1527, 0.0
      %v1548 = vmax.f32 %v1529, 0.0
      %v1549 = vmax.f32 %v1478, 0.0
      %v1550 = vmax.f32 %v1480, 0.0
      %v1551 = vmax.f32 %v1531, 0.0
      %v1552 = vmax.f32 %v1533, 0.0
      %v1553 = vmax.f32 %v1484, 0.0
      %v1554 = vmax.f32 %v1486, 0.0
      %v1555 = vmax.f32 %v1537, 0.0
      %v1556 = vmax.f32 %v1539, 0.0
      %v1557 = vmax.f32 %v1488, 0.0
      %v1558 = vmax.f32 %v1490, 0.0
      %v1559 = vmax.f32 %v1541, 0.0
      %v1560 = vmax.f32 %v1543, 0.0
      %v1561 = vpack.c.bf16 %v1549, %v1545
      %v1562 = vpack.c.bf16 %v1550, %v1546
      %v1563 = vpack.c.bf16 %v1551, %v1547
      %v1564 = vpack.c.bf16 %v1552, %v1548
      %v1565 = vpack.c.bf16 %v1557, %v1553
      %v1566 = vpack.c.bf16 %v1558, %v1554
      %v1567 = vpack.c.bf16 %v1559, %v1555
      %v1568 = vpack.c.bf16 %v1560, %v1556
      %1569 = vmatprep.subr.bf16.mxu0 %v1562
      %1570 = vmatpush1.bf16.msra.mxu0 %v1561
      %1571 = vmatprep.subr.bf16.mxu0 %v1566
      %1572 = vmatpush1.bf16.msra.mxu0 %v1565
      %1573 = vmatprep.subr.bf16.mxu0 0
      %1574 = vmatpush1.bf16.msra.mxu0 0
      %1575 = vmatprep.subr.bf16.mxu0 0
      %1576 = vmatpush1.bf16.msra.mxu0 0
      %1577 = vmatprep.subr.bf16.mxu0 0
      %1578 = vmatpush1.bf16.msra.mxu0 0
      %1579 = vmatprep.subr.bf16.mxu0 0
      %1580 = vmatpush1.bf16.msra.mxu0 0
      %1581 = vmatprep.subr.bf16.mxu0 0
      %1582 = vmatpush1.bf16.msra.mxu0 0
      %1583 = vmatprep.subr.bf16.mxu0 0
      %1584 = vmatpush1.bf16.msra.mxu0 0
      %1585 = vmatprep.subr.bf16.mxu0 0
      %1586 = vmatpush1.bf16.msra.mxu0 0
      %1587 = vmatprep.subr.bf16.mxu0 0
      %1588 = vmatpush1.bf16.msra.mxu0 0
      %1589 = vmatprep.subr.bf16.mxu0 0
      %1590 = vmatpush1.bf16.msra.mxu0 0
      %1591 = vmatprep.subr.bf16.mxu0 0
      %1592 = vmatpush1.bf16.msra.mxu0 0
      %1593 = vmatprep.subr.bf16.mxu0 0
      %1594 = vmatpush1.bf16.msra.mxu0 0
      %1595 = vmatprep.subr.bf16.mxu0 0
      %1596 = vmatpush1.bf16.msra.mxu0 0
      %1597 = vmatprep.subr.bf16.mxu0 0
      %1598 = vmatpush1.bf16.msra.mxu0 0
      %1599 = vmatprep.subr.bf16.mxu0 0
      %1600 = vmatpush1.bf16.msra.mxu0 0
      %1601 = vmatprep.mubr.bf16.mxu0 0
      %1602 = vmatmul.mubr.bf16.gmra.mrb[0].mxu0 %v500
      %v1603 = vpop.f32.mrb[0].mxu0
      %v1604 = vadd.f32 %v487, %v1603
      %v1605 = vpop.f32.mrb[0].mxu0
      %v1606 = vadd.f32 %v487, %v1605
      %v1607 = vpop.f32.mrb[0].mxu0
      %v1608 = vadd.f32 %v492, %v1607
      %v1609 = vpop.f32.mrb[0].mxu0
      %v1610 = vadd.f32 %v492, %v1609
      %1611 = vmatprep.mubr.bf16.mxu0 0
      %1612 = vmatmul.mubr.bf16.gmra.mrb[0].mxu0 %v503
      %v1613 = vpop.f32.mrb[0].mxu0
      %v1614 = vadd.f32 %v497, %v1613
      %v1615 = vpop.f32.mrb[0].mxu0
      %v1616 = vadd.f32 %v497, %v1615
      %v1617 = vpop.f32.mrb[0].mxu0
      %v1618 = vpop.f32.mrb[0].mxu0
      %1619 = vdwg.mxu0
      %1620 = vmatprep.subr.bf16.mxu0 %v1564
      %1621 = vmatpush1.bf16.msra.mxu0 %v1563
      %1622 = vmatprep.subr.bf16.mxu0 %v1568
      %1623 = vmatpush1.bf16.msra.mxu0 %v1567
      %1624 = vmatprep.subr.bf16.mxu0 0
      %1625 = vmatpush1.bf16.msra.mxu0 0
      %1626 = vmatprep.subr.bf16.mxu0 0
      %1627 = vmatpush1.bf16.msra.mxu0 0
      %1628 = vmatprep.subr.bf16.mxu0 0
      %1629 = vmatpush1.bf16.msra.mxu0 0
      %1630 = vmatprep.subr.bf16.mxu0 0
      %1631 = vmatpush1.bf16.msra.mxu0 0
      %1632 = vmatprep.subr.bf16.mxu0 0
      %1633 = vmatpush1.bf16.msra.mxu0 0
      %1634 = vmatprep.subr.bf16.mxu0 0
      %1635 = vmatpush1.bf16.msra.mxu0 0
      %1636 = vmatprep.subr.bf16.mxu0 0
      %1637 = vmatpush1.bf16.msra.mxu0 0
      %1638 = vmatprep.subr.bf16.mxu0 0
      %1639 = vmatpush1.bf16.msra.mxu0 0
      %1640 = vmatprep.subr.bf16.mxu0 0
      %1641 = vmatpush1.bf16.msra.mxu0 0
      %1642 = vmatprep.subr.bf16.mxu0 0
      %1643 = vmatpush1.bf16.msra.mxu0 0
      %1644 = vmatprep.subr.bf16.mxu0 0
      %1645 = vmatpush1.bf16.msra.mxu0 0
      %1646 = vmatprep.subr.bf16.mxu0 0
      %1647 = vmatpush1.bf16.msra.mxu0 0
      %1648 = vmatprep.subr.bf16.mxu0 0
      %1649 = vmatpush1.bf16.msra.mxu0 0
      %1650 = vmatprep.subr.bf16.mxu0 0
      %1651 = vmatpush1.bf16.msra.mxu0 0
      %1652 = vmatprep.mubr.bf16.mxu0 0
      %1653 = vmatmul.mubr.bf16.gmra.mrb[0].mxu0 %v500
      %v1654 = vpop.f32.mrb[0].mxu0
      %v1655 = vadd.f32 %v487, %v1654
      %v1656 = vpop.f32.mrb[0].mxu0
      %v1657 = vadd.f32 %v487, %v1656
      %v1658 = vpop.f32.mrb[0].mxu0
      %v1659 = vadd.f32 %v492, %v1658
      %v1660 = vpop.f32.mrb[0].mxu0
      %v1661 = vadd.f32 %v492, %v1660
      %1662 = vmatprep.mubr.bf16.mxu0 0
      %1663 = vmatmul.mubr.bf16.gmra.mrb[0].mxu0 %v503
      %v1664 = vpop.f32.mrb[0].mxu0
      %v1665 = vadd.f32 %v497, %v1664
      %v1666 = vpop.f32.mrb[0].mxu0
      %v1667 = vadd.f32 %v497, %v1666
      %v1668 = vpop.f32.mrb[0].mxu0
      %v1669 = vpop.f32.mrb[0].mxu0
      %1670 = vdwg.mxu0
      %v1671 = vmax.f32 %v1614, 0.0
      %v1672 = vmax.f32 %v1616, 0.0
      %v1673 = vmax.f32 %v1665, 0.0
      %v1674 = vmax.f32 %v1667, 0.0
      %v1675 = vsub.f32 0.0, %v1671
      %v1676 = vsub.f32 0.0, %v1672
      %v1677 = vsub.f32 0.0, %v1673
      %v1678 = vsub.f32 0.0, %v1674
      %v1679 = vmul.f32 %v1675, 0.1875
      %v1680 = vmul.f32 %v1676, 0.1875
      %v1681 = vmul.f32 %v1677, 0.1875
      %v1682 = vmul.f32 %v1678, 0.1875
      %v1683 = vmul.f32 %v1679, 1.442695
      %v1684 = vpow.pop %v1683
      %v1685 = vmul.f32 %v1680, 1.442695
      %v1686 = vpow.pop %v1685
      %v1687 = vmul.f32 %v1681, 1.442695
      %v1688 = vpow.pop %v1687
      %v1689 = vmul.f32 %v1682, 1.442695
      %v1690 = vpow.pop %v1689
      %v1691 = vsub.f32 1.0, %v1684
      %v1692 = vsub.f32 1.0, %v1686
      %v1693 = vsub.f32 1.0, %v1688
      %v1694 = vsub.f32 1.0, %v1690
      %v1695 = vmul.f32 %v1381, %v1691
      %v1696 = vmul.f32 %v1382, %v1692
      %v1697 = vlaneseq
      %v1698 = vshrl.u32 %v1697, 7
      %v1699 = vsub.s32 0, %v1698
      %v1700 = vrot.slane %v1695, %v1699
      %v1701 = vlaneseq
      %v1702 = vshrl.u32 %v1701, 7
      %v1703 = vsub.s32 0, %v1702
      %v1704 = vrot.slane %v1696, %v1703
      %v1705 = vmul.f32 %v1700, %v1604
      %v1706 = vmul.f32 %v1704, %v1606
      %v1707 = vmul.f32 %v1700, %v1608
      %v1708 = vmul.f32 %v1704, %v1610
      %v1709 = vadd.f32 %v1375, %v1705
      %v1710 = vadd.f32 %v1376, %v1706
      %v1711 = vadd.f32 %v1377, %v1707
      %v1712 = vadd.f32 %v1378, %v1708
      %v1713 = vsub.f32 1.0, %v1691
      %v1714 = vsub.f32 1.0, %v1692
      %v1715 = vmul.f32 %v1381, %v1713
      %v1716 = vmul.f32 %v1382, %v1714
      %v1717 = vmul.f32 %v1715, %v1693
      %v1718 = vmul.f32 %v1716, %v1694
      %v1719 = vlaneseq
      %v1720 = vshrl.u32 %v1719, 7
      %v1721 = vsub.s32 0, %v1720
      %v1722 = vrot.slane %v1717, %v1721
      %v1723 = vlaneseq
      %v1724 = vshrl.u32 %v1723, 7
      %v1725 = vsub.s32 0, %v1724
      %v1726 = vrot.slane %v1718, %v1725
      %v1727 = vmul.f32 %v1722, %v1655
      %v1728 = vmul.f32 %v1726, %v1657
      %v1729 = vmul.f32 %v1722, %v1659
      %v1730 = vmul.f32 %v1726, %v1661
      %v1731 = vadd.f32 %v1709, %v1727
      %v1732 = vadd.f32 %v1710, %v1728
      %v1733 = vadd.f32 %v1711, %v1729
      %v1734 = vadd.f32 %v1712, %v1730
      %v1735 = vpack.c.bf16 %v1733, %v1731
      %v1736 = vpack.c.bf16 %v1734, %v1732
      %1738 = vset.pattern.permute.xlu0 0
      %1739 = vperm.xlu0 %1738, %v246
      %v1740 = vpop.permute.xlu0 %1739
      %vm1742 = vcmask 130048
      %v1744 = vsel %vm1742, %v238, 0
      %1746 = vmatprep.subr.bf16.mxu0 %v1736
      %1747 = vmatpush1.bf16.msra.mxu0 %v1735
      %1748 = vmatprep.subr.bf16.mxu0 0
      %1749 = vmatpush1.bf16.msra.mxu0 0
      %1750 = vmatprep.subr.bf16.mxu0 0
      %1751 = vmatpush1.bf16.msra.mxu0 0
      %1752 = vmatprep.subr.bf16.mxu0 0
      %1753 = vmatpush1.bf16.msra.mxu0 0
      %1754 = vmatprep.subr.bf16.mxu0 0
      %1755 = vmatpush1.bf16.msra.mxu0 0
      %1756 = vmatprep.subr.bf16.mxu0 0
      %1757 = vmatpush1.bf16.msra.mxu0 0
      %1758 = vmatprep.subr.bf16.mxu0 0
      %1759 = vmatpush1.bf16.msra.mxu0 0
      %1760 = vmatprep.subr.bf16.mxu0 0
      %1761 = vmatpush1.bf16.msra.mxu0 0
      %1762 = vmatprep.subr.bf16.mxu0 0
      %1763 = vmatpush1.bf16.msra.mxu0 0
      %1764 = vmatprep.subr.bf16.mxu0 0
      %1765 = vmatpush1.bf16.msra.mxu0 0
      %1766 = vmatprep.subr.bf16.mxu0 0
      %1767 = vmatpush1.bf16.msra.mxu0 0
      %1768 = vmatprep.subr.bf16.mxu0 0
      %1769 = vmatpush1.bf16.msra.mxu0 0
      %1770 = vmatprep.subr.bf16.mxu0 0
      %1771 = vmatpush1.bf16.msra.mxu0 0
      %1772 = vmatprep.subr.bf16.mxu0 0
      %1773 = vmatpush1.bf16.msra.mxu0 0
      %1774 = vmatprep.subr.bf16.mxu0 0
      %1775 = vmatpush1.bf16.msra.mxu0 0
      %1776 = vmatprep.subr.bf16.mxu0 0
      %1777 = vmatpush1.bf16.msra.mxu0 0
      %1778 = vmatprep.mubr.bf16.mxu0 0
      %1779 = vmatmul.mubr.bf16.gmra.mrb[0].mxu0 %v1744
      %v1780 = vpop.f32.mrb[0].mxu0
      %v1781 = vadd.f32 %v1740, %v1780
      %v1782 = vpop.f32.mrb[0].mxu0
      %v1783 = vadd.f32 %v1740, %v1782
      %v1784 = vpop.f32.mrb[0].mxu0
      %v1785 = vpop.f32.mrb[0].mxu0
      %1786 = vdwg.mxu0
      %v1787 = vxor.u32 %v1781, 2147483648
      %v1788 = vxor.u32 %v1783, 2147483648
      %v1789 = vmul.f32 %v1787, 1.442695
      %v1790 = vpow.pop %v1789
      %v1791 = vmul.f32 %v1788, 1.442695
      %v1792 = vpow.pop %v1791
      %v1793 = vadd.f32 %v1790, 1.0
      %v1794 = vadd.f32 %v1792, 1.0
      %v1795 = vrcp.pop %v1793
      %v1796 = vmul.f32 1.0, %v1795
      %v1797 = vrcp.pop %v1794
      %v1798 = vmul.f32 1.0, %v1797
      %1799 = vst [vmem:[%s224] sm:$0xff] %v1796
      %1800 = vst [vmem:[%s224 + $0x8] sm:$0xff] %v1798
      %p1801 = scmp.lt.s32.totalorder %s16, 1
      %s1802 = scalar_select %p1801, %s16, 1
      %s1803 = smul.addr %s1802, 2
      %s1804 = smul.addr %s1803, 8
      %s1805 = scalar_lea.vmem %s5, %s1804
      // Predicated region
      $region41: #{generator_forward.1} parent=39 // pred_check
        %p1806 = pneg %p144
      $region42: #{generator_forward.1} parent=39 // pred_check_branch
        %1808 = sbr.rel (%p1806) target = $region44
      $region43: #{generator_forward.1} parent=39 // pred_region
        _
      $region44: #{generator_forward.1} parent=39 // pred_fallthru
        _
    $region40: #{generator_forward.1} parent=5 // pred_fallthru
      _
    %p1809 = scmp.le.s32.totalorder 2, %s11
    // Predicated region
    $region45: #{generator_forward.1} parent=5 // pred_check
      %p1810 = pneg %p1809
    $region46: #{generator_forward.1} parent=5 // pred_check_branch
      %1812 = sbr.rel (%p1810) target = $region48
    $region47: #{generator_forward.1} parent=5 // pred_region
      %s1813 = ssub.s32 %s11, 2
      // Predicated region
      $region49: #{generator_forward.1} parent=47 // pred_check
        %p1814 = pneg %p150
      $region50: #{generator_forward.1} parent=47 // pred_check_branch
        %1816 = sbr.rel (%p1814) target = $region52
      $region51: #{generator_forward.1} parent=47 // pred_region
        %p1817 = scmp.lt.s32.totalorder %s17, 1
        %s1818 = scalar_select %p1817, %s17, 1
        %s1819 = smul.addr %s1818, 2
        %s1820 = smul.addr %s1819, 8
        %s1821 = scalar_lea.vmem %s5, %s1820
      $region52: #{generator_forward.1} parent=47 // pred_fallthru
        _
    $region48: #{generator_forward.1} parent=5 // pred_fallthru
      _
  $region6: #{generator_forward.1} parent=0 // loop_footer
    %s15 = sadd.s32 1, %s11
  $region7: #{generator_forward.1} parent=0 // loop_footer_branch
    %10 = sbr.rel target = $region3
  $region8: #{generator_forward.1} parent=0 // loop_exit
    _

</llo_original>
